<compile_context>
chip_gen: v7x
topology: tpu7x:2x2x1
jax: 0.10.0
libtpu: 0.0.40
codegen_flags: <defaults>
</compile_context>

<pallas_src>
import functools

import jax
import jax.numpy as jnp
from jax.experimental import pallas as pl
from jax.experimental.pallas import tpu as pltpu


def _round_up(x, m):
    return (x + m - 1) // m * m


def _pick_row_tile(H, W, cin, crh):
    """Rows per grid step: whole image if small, else bound the working set."""
    wp = _round_up(W + 2, 8)
    # Dominant per-row VMEM: bf16 fused-K patch row + f32 fused-N conv output row.
    bytes_per_row = wp * 3 * cin * 2 + wp * 3 * crh * 4
    th = max(8, (6 << 20) // max(1, bytes_per_row))
    if th >= H:
        return H
    while H % th:                                    # need a divisor of H
        th -= 1
    return max(th, 1)


def _residual_kernel(x_ref, w3_ref, w1_ref, out_ref, xp_ref, *, H, W, Wp, th):
    """One (image, row-block) grid step.

    x_ref  : (1, H, W, Cin)      full input image (resident across row blocks)
    w3_ref : (3*Cin, 3*Crh)      3x3 weights, [kh*Cin + c, kw*Crh + n] (bf16)
    w1_ref : (Crh, Cout)         1x1 weights (bf16)
    out_ref: (1, th, W, Cout)    output row block
    xp_ref : (H+2, Wp, Cin)      f32 scratch: zero halo + ReLU(x) interior
    """
    r = pl.program_id(1)
    r0 = r * th
    cin = x_ref.shape[-1]
    crh = w3_ref.shape[-1] // 3
    cout = w1_ref.shape[-1]

    # Once per image (r == 0): zero the halo strips and write ReLU(x) into the
    # interior of the padded scratch.  Interior writes never touch the halo,
    # so re-zeroing per image keeps this correct under the megacore batch
    # split (each core owns its own scratch and its own subset of b).
    @pl.when(r == 0)
    def _():
        xp_ref[0:1, :, :] = jnp.zeros((1, Wp, cin), jnp.float32)
        xp_ref[H + 1:H + 2, :, :] = jnp.zeros((1, Wp, cin), jnp.float32)
        xp_ref[:, 0:1, :] = jnp.zeros((H + 2, 1, cin), jnp.float32)
        xp_ref[:, W + 1:Wp, :] = jnp.zeros((H + 2, Wp - W - 1, cin), jnp.float32)
        xp_ref[1:H + 1, 1:W + 1, :] = jnp.maximum(x_ref[0], 0.0).astype(jnp.float32)

    # Load the (th+2)-row padded patch once, cast to bf16 once; kh views are
    # free slices along the untiled outer axis.  im2col over kh only:
    # contraction dim of the matmul becomes 3*Cin.
    patch = xp_ref[pl.ds(r0, th + 2)].astype(jnp.bfloat16)        # (th+2, Wp, Cin)
    pcat = jnp.concatenate([patch[kh:kh + th] for kh in range(3)],
                           axis=-1)                               # (th, Wp, 3*Cin)
    pcat = pcat.reshape(th * Wp, 3 * cin)                         # free: Wp % 8 == 0

    # Single fat MXU matmul for the whole 3x3 conv (kw fused into N = 3*Crh),
    # f32 accumulation.  The per-kw alignment is a small shift-and-add on the
    # Crh-wide result (sublane shift by kw, lane shift by kw*Crh).
    z = jnp.dot(pcat, w3_ref[...],
                preferred_element_type=jnp.float32)               # (th*Wp, 3*Crh)
    z = z.reshape(th, Wp, 3 * crh)
    acc = (z[:, 0:W, 0 * crh:1 * crh]
           + z[:, 1:1 + W, 1 * crh:2 * crh]
           + z[:, 2:2 + W, 2 * crh:3 * crh])                      # (th, W, Crh)

    # ReLU then 1x1 conv (bf16 operands, f32 accumulation).
    hid = jnp.maximum(acc, 0.0).astype(jnp.bfloat16).reshape(th * W, crh)
    y = jnp.dot(hid, w1_ref[...], preferred_element_type=jnp.float32)  # (th*W, Cout)

    # Residual add from the already-resident input block (single HBM stream).
    xres = x_ref[0, pl.ds(r0, th)].astype(jnp.float32).reshape(th * W, cout)
    out_ref[0] = (xres + y).reshape(th, W, cout).astype(out_ref.dtype)


def residual_forward_nhwc(x, w3_hwio, w1_io):
    """x: [B, H, W, Cin]; w3_hwio: [3, 3, Cin, Crh]; w1_io: [Crh, Cout]."""
    B, H, W, Cin = x.shape
    Crh = w3_hwio.shape[-1]
    Cout = w1_io.shape[-1]
    assert Cout == Cin, "residual add requires num_hiddens == in_channels"

    Wp = _round_up(W + 2, 8)                 # padded width, sublane aligned
    th = _pick_row_tile(H, W, Cin, Crh)
    n_rb = H // th

    # Fold kh into K and kw into N:
    #   w3cat[kh*Cin + c, kw*Crh + n] = w3_hwio[kh, kw, c, n]
    w3cat = jnp.transpose(w3_hwio, (0, 2, 1, 3)).reshape(3 * Cin, 3 * Crh)
    w3cat = w3cat.astype(jnp.bfloat16)
    w1b = w1_io.astype(jnp.bfloat16)

    kernel = functools.partial(_residual_kernel, H=H, W=W, Wp=Wp, th=th)

    return pl.pallas_call(
        kernel,
        out_shape=jax.ShapeDtypeStruct((B, H, W, Cout), x.dtype),
        grid_spec=pltpu.PrefetchScalarGridSpec(
            num_scalar_prefetch=0,
            grid=(B, n_rb),
            in_specs=[
                # Whole image; index_map ignores r -> stays resident across
                # row blocks (no re-DMA), read from HBM exactly once.
                pl.BlockSpec((1, H, W, Cin), lambda b, r: (b, 0, 0, 0)),
                pl.BlockSpec((3 * Cin, 3 * Crh), lambda b, r: (0, 0)),
                pl.BlockSpec((Crh, Cout), lambda b, r: (0, 0)),
            ],
            out_specs=pl.BlockSpec((1, th, W, Cout), lambda b, r: (b, r, 0, 0)),
            scratch_shapes=[pltpu.VMEM((H + 2, Wp, Cin), jnp.float32)],
        ),
        compiler_params=pltpu.CompilerParams(
            dimension_semantics=("parallel", "arbitrary"),
            vmem_limit_bytes=48 * 1024 * 1024),
    )(x, w3cat, w1b)


def residual_forward(x_nchw, w3_oihw, w1_oihw):
    """PyTorch-layout entry point.
    x_nchw: [B, Cin, H, W]; w3_oihw: [Crh, Cin, 3, 3]; w1_oihw: [Cout, Crh, 1, 1].
    """
    x = jnp.transpose(x_nchw, (0, 2, 3, 1))                   # NHWC
    w3 = jnp.transpose(w3_oihw, (2, 3, 1, 0))                 # [3, 3, Cin, Crh]
    w1 = jnp.transpose(w1_oihw[:, :, 0, 0], (1, 0))           # [Crh, Cout]
    out = residual_forward_nhwc(x, w3, w1)
    return jnp.transpose(out, (0, 3, 1, 2))                   # back to NCHW


def _reference(x_nchw, w3_oihw, w1_oihw):
    """Plain-JAX (lax conv) reference for correctness checking."""
    dn = jax.lax.conv_dimension_numbers(x_nchw.shape, w3_oihw.shape,
                                        ("NCHW", "OIHW", "NCHW"))
    h = jax.lax.conv_general_dilated(jnp.maximum(x_nchw, 0.0), w3_oihw,
                                     (1, 1), ((1, 1), (1, 1)),
                                     dimension_numbers=dn)
    h = jnp.maximum(h, 0.0)
    y = jax.lax.conv_general_dilated(h, w1_oihw, (1, 1), ((0, 0), (0, 0)),
                                     dimension_numbers=dn)
    return x_nchw + y


if __name__ == "__main__":
    # Small but VQ-VAE-realistic channel counts (lane-dense, MXU-friendly).
    B, Cin, H, W = 2, 128, 16, 16
    num_hiddens = Cin
    num_residual_hiddens = 32

    key = jax.random.PRNGKey(0)
    kx, k3, k1 = jax.random.split(key, 3)
    x = jax.random.normal(kx, (B, Cin, H, W), dtype=jnp.float32)
    # Deterministic synthetic weights (PyTorch conv weight layout OIHW).
    w3 = jax.random.normal(k3, (num_residual_hiddens, Cin, 3, 3),
                           dtype=jnp.float32) * (1.0 / (3 * 3 * Cin) ** 0.5)
    w1 = jax.random.normal(k1, (num_hiddens, num_residual_hiddens, 1, 1),
                           dtype=jnp.float32) * (1.0 / num_residual_hiddens ** 0.5)

    fwd = jax.jit(residual_forward)
    out = jax.block_until_ready(fwd(x, w3, w1))

    ref = _reference(x, w3, w1)
    assert out.shape == (B, num_hiddens, H, W)
    max_err = float(jnp.max(jnp.abs(out - ref)))
    # bf16 MXU operands with f32 accumulation -> small rounding error vs f32 ref.
    assert jnp.allclose(out, ref, atol=5e-2, rtol=5e-2), \
        f"mismatch vs reference (max abs err {max_err})"

    print("KERNEL_OK")
</pallas_src>

<mosaic_0001>
module attributes {stable_mosaic.version = 11 : i64} {
  func.func @_residual_kernel(%arg0: i32, %arg1: i32, %arg2: memref<1x16x16x128xf32, #tpu.memory_space<vmem>>, %arg3: memref<384x96xbf16, #tpu.memory_space<vmem>>, %arg4: memref<32x128xbf16, #tpu.memory_space<vmem>>, %arg5: memref<1x16x16x128xf32, #tpu.memory_space<vmem>>, %arg6: memref<18x24x128xf32, #tpu.memory_space<vmem>>) attributes {dimension_semantics = [#tpu.dimension_semantics<parallel>, #tpu.dimension_semantics<arbitrary>], iteration_bounds = array<i64: 2, 1>, scalar_prefetch = 0 : i64, scratch_operands = 1 : i64, tpu.core_type = #tpu.core_type<tc>, window_params = [{transform_indices = @transform_0, window_bounds = array<i64: 1, 16, 16, 128>}, {pipeline_mode = #tpu.pipeline_mode<synchronous>, transform_indices = @transform_1, window_bounds = array<i64: 384, 96>}, {pipeline_mode = #tpu.pipeline_mode<synchronous>, transform_indices = @transform_2, window_bounds = array<i64: 32, 128>}, {transform_indices = @transform_3, window_bounds = array<i64: 1, 16, 16, 128>}]} {
    %c16_i32 = arith.constant 16 : i32
    %0 = arith.muli %arg1, %c16_i32 : i32
    %c0_i32 = arith.constant 0 : i32
    %1 = arith.cmpi eq, %arg1, %c0_i32 : i32
    %2 = arith.extui %1 : i1 to i32
    %c0_i32_0 = arith.constant 0 : i32
    %3 = arith.cmpi ne, %2, %c0_i32_0 : i32
    scf.if %3 {
      %cst_15 = arith.constant 0.000000e+00 : f32
      %35 = vector.broadcast %cst_15 : f32 to vector<1x24x128xf32>
      %c0_16 = arith.constant 0 : index
      %c0_17 = arith.constant 0 : index
      %c0_18 = arith.constant 0 : index
      %36 = vector.load %arg6[%c0_16, %c0_17, %c0_18] : memref<18x24x128xf32, #tpu.memory_space<vmem>>, vector<1x24x128xf32>
      tpu.vector_store %arg6[%c0_16, %c0_17, %c0_18], %35 {strides = array<i32>} : memref<18x24x128xf32, #tpu.memory_space<vmem>>, vector<1x24x128xf32>,
      %cst_19 = arith.constant 0.000000e+00 : f32
      %37 = vector.broadcast %cst_19 : f32 to vector<1x24x128xf32>
      %c17 = arith.constant 17 : index
      %c0_20 = arith.constant 0 : index
      %c0_21 = arith.constant 0 : index
      %38 = vector.load %arg6[%c17, %c0_20, %c0_21] : memref<18x24x128xf32, #tpu.memory_space<vmem>>, vector<1x24x128xf32>
      tpu.vector_store %arg6[%c17, %c0_20, %c0_21], %37 {strides = array<i32>} : memref<18x24x128xf32, #tpu.memory_space<vmem>>, vector<1x24x128xf32>,
      %cst_22 = arith.constant 0.000000e+00 : f32
      %39 = vector.broadcast %cst_22 : f32 to vector<18x1x128xf32>
      %c0_23 = arith.constant 0 : index
      %c0_24 = arith.constant 0 : index
      %c0_25 = arith.constant 0 : index
      %40 = vector.load %arg6[%c0_23, %c0_24, %c0_25] : memref<18x24x128xf32, #tpu.memory_space<vmem>>, vector<18x1x128xf32>
      tpu.vector_store %arg6[%c0_23, %c0_24, %c0_25], %39 {strides = array<i32>} : memref<18x24x128xf32, #tpu.memory_space<vmem>>, vector<18x1x128xf32>,
      %cst_26 = arith.constant 0.000000e+00 : f32
      %41 = vector.broadcast %cst_26 : f32 to vector<18x7x128xf32>
      %c0_27 = arith.constant 0 : index
      %c17_28 = arith.constant 17 : index
      %c0_29 = arith.constant 0 : index
      %42 = vector.load %arg6[%c0_27, %c17_28, %c0_29] : memref<18x24x128xf32, #tpu.memory_space<vmem>>, vector<18x7x128xf32>
      tpu.vector_store %arg6[%c0_27, %c17_28, %c0_29], %41 {strides = array<i32>} : memref<18x24x128xf32, #tpu.memory_space<vmem>>, vector<18x7x128xf32>,
      %c0_30 = arith.constant 0 : index
      %c0_31 = arith.constant 0 : index
      %c0_32 = arith.constant 0 : index
      %c0_33 = arith.constant 0 : index
      %43 = vector.load %arg2[%c0_30, %c0_31, %c0_32, %c0_33] : memref<1x16x16x128xf32, #tpu.memory_space<vmem>>, vector<1x16x16x128xf32>
      %44 = vector.shape_cast %43 : vector<1x16x16x128xf32> to vector<16x16x128xf32>
      %cst_34 = arith.constant 0.000000e+00 : f32
      %45 = vector.broadcast %cst_34 : f32 to vector<16x16x128xf32>
      %46 = arith.maximumf %44, %45 : vector<16x16x128xf32>
      %c1 = arith.constant 1 : index
      %c1_35 = arith.constant 1 : index
      %c0_36 = arith.constant 0 : index
      %47 = vector.load %arg6[%c1, %c1_35, %c0_36] : memref<18x24x128xf32, #tpu.memory_space<vmem>>, vector<16x16x128xf32>
      tpu.vector_store %arg6[%c1, %c1_35, %c0_36], %46 {strides = array<i32>} : memref<18x24x128xf32, #tpu.memory_space<vmem>>, vector<16x16x128xf32>,
    } else {
    }
    %4 = arith.index_cast %0 : i32 to index
    %c0 = arith.constant 0 : index
    %c0_1 = arith.constant 0 : index
    %5 = vector.load %arg6[%4, %c0, %c0_1] : memref<18x24x128xf32, #tpu.memory_space<vmem>>, vector<18x24x128xf32>
    %6 = arith.truncf %5 : vector<18x24x128xf32> to vector<18x24x128xbf16>
    %7 = vector.extract_strided_slice %6 {offsets = [0, 0, 0], sizes = [16, 24, 128], strides = [1, 1, 1]} : vector<18x24x128xbf16> to vector<16x24x128xbf16>
    %8 = vector.extract_strided_slice %6 {offsets = [1, 0, 0], sizes = [16, 24, 128], strides = [1, 1, 1]} : vector<18x24x128xbf16> to vector<16x24x128xbf16>
    %9 = vector.extract_strided_slice %6 {offsets = [2, 0, 0], sizes = [16, 24, 128], strides = [1, 1, 1]} : vector<18x24x128xbf16> to vector<16x24x128xbf16>
    %10 = tpu.concatenate %7, %8, %9 in 2 : vector<16x24x128xbf16>, vector<16x24x128xbf16>, vector<16x24x128xbf16> -> vector<16x24x384xbf16>
    %11 = vector.shape_cast %10 : vector<16x24x384xbf16> to vector<384x384xbf16>
    %c0_2 = arith.constant 0 : index
    %c0_3 = arith.constant 0 : index
    %12 = vector.load %arg3[%c0_2, %c0_3] : memref<384x96xbf16, #tpu.memory_space<vmem>>, vector<384x96xbf16>
    %cst = arith.constant dense<0.000000e+00> : vector<384x96xf32>
    %13 = tpu.matmul %11, %12, %cst {dimension_numbers = #tpu.dot_dimension_numbers<[1], [0], [0], [1], [0, 0, 1, 1], [], []>} : vector<384x384xbf16>, vector<384x96xbf16>, vector<384x96xf32> -> vector<384x96xf32>
    %14 = vector.shape_cast %13 : vector<384x96xf32> to vector<16x24x96xf32>
    %15 = vector.extract_strided_slice %14 {offsets = [0, 0, 0], sizes = [16, 16, 32], strides = [1, 1, 1]} : vector<16x24x96xf32> to vector<16x16x32xf32>
    %16 = vector.extract_strided_slice %14 {offsets = [0, 1, 32], sizes = [16, 16, 32], strides = [1, 1, 1]} : vector<16x24x96xf32> to vector<16x16x32xf32>
    %17 = arith.addf %15, %16 : vector<16x16x32xf32>
    %18 = vector.extract_strided_slice %14 {offsets = [0, 2, 64], sizes = [16, 16, 32], strides = [1, 1, 1]} : vector<16x24x96xf32> to vector<16x16x32xf32>
    %19 = arith.addf %17, %18 : vector<16x16x32xf32>
    %cst_4 = arith.constant 0.000000e+00 : f32
    %20 = vector.broadcast %cst_4 : f32 to vector<16x16x32xf32>
    %21 = arith.maximumf %19, %20 : vector<16x16x32xf32>
    %22 = arith.truncf %21 : vector<16x16x32xf32> to vector<16x16x32xbf16>
    %23 = vector.shape_cast %22 : vector<16x16x32xbf16> to vector<256x32xbf16>
    %c0_5 = arith.constant 0 : index
    %c0_6 = arith.constant 0 : index
    %24 = vector.load %arg4[%c0_5, %c0_6] : memref<32x128xbf16, #tpu.memory_space<vmem>>, vector<32x128xbf16>
    %cst_7 = arith.constant dense<0.000000e+00> : vector<256x128xf32>
    %25 = tpu.matmul %23, %24, %cst_7 {dimension_numbers = #tpu.dot_dimension_numbers<[1], [0], [0], [1], [0, 0, 1, 1], [], []>} : vector<256x32xbf16>, vector<32x128xbf16>, vector<256x128xf32> -> vector<256x128xf32>
    %c0_8 = arith.constant 0 : index
    %26 = arith.index_cast %0 : i32 to index
    %c0_9 = arith.constant 0 : index
    %c0_10 = arith.constant 0 : index
    %27 = vector.load %arg2[%c0_8, %26, %c0_9, %c0_10] : memref<1x16x16x128xf32, #tpu.memory_space<vmem>>, vector<1x16x16x128xf32>
    %28 = vector.shape_cast %27 : vector<1x16x16x128xf32> to vector<16x16x128xf32>
    %29 = vector.shape_cast %28 : vector<16x16x128xf32> to vector<256x128xf32>
    %30 = arith.addf %29, %25 : vector<256x128xf32>
    %31 = vector.shape_cast %30 : vector<256x128xf32> to vector<16x16x128xf32>
    %c0_11 = arith.constant 0 : index
    %c0_12 = arith.constant 0 : index
    %c0_13 = arith.constant 0 : index
    %c0_14 = arith.constant 0 : index
    %32 = vector.load %arg5[%c0_11, %c0_12, %c0_13, %c0_14] : memref<1x16x16x128xf32, #tpu.memory_space<vmem>>, vector<1x16x16x128xf32>
    %33 = vector.shape_cast %32 : vector<1x16x16x128xf32> to vector<16x16x128xf32>
    %34 = vector.shape_cast %31 : vector<16x16x128xf32> to vector<1x16x16x128xf32>
    tpu.vector_store %arg5[%c0_11, %c0_12, %c0_13, %c0_14], %34 {strides = array<i32>} : memref<1x16x16x128xf32, #tpu.memory_space<vmem>>, vector<1x16x16x128xf32>,
    return
  }
  func.func @transform_0(%arg0: i32, %arg1: i32) -> (i32, i32, i32, i32) {
    %c0_i32 = arith.constant 0 : i32
    %c0_i32_0 = arith.constant 0 : i32
    %c0_i32_1 = arith.constant 0 : i32
    %c0_i32_2 = arith.constant 0 : i32
    return %arg0, %c0_i32, %c0_i32_0, %c0_i32_1 : i32, i32, i32, i32
  }
  func.func @transform_1(%arg0: i32, %arg1: i32) -> (i32, i32) {
    %c0_i32 = arith.constant 0 : i32
    %c0_i32_0 = arith.constant 0 : i32
    %c0_i32_1 = arith.constant 0 : i32
    return %c0_i32, %c0_i32_0 : i32, i32
  }
  func.func @transform_2(%arg0: i32, %arg1: i32) -> (i32, i32) {
    %c0_i32 = arith.constant 0 : i32
    %c0_i32_0 = arith.constant 0 : i32
    %c0_i32_1 = arith.constant 0 : i32
    return %c0_i32, %c0_i32_0 : i32, i32
  }
  func.func @transform_3(%arg0: i32, %arg1: i32) -> (i32, i32, i32, i32) {
    %c0_i32 = arith.constant 0 : i32
    %c0_i32_0 = arith.constant 0 : i32
    %c0_i32_1 = arith.constant 0 : i32
    return %arg0, %arg1, %c0_i32, %c0_i32_0 : i32, i32, i32, i32
  }
}

</mosaic_0001>

<llo_original>
// kernel: residual_forward.1
$region0: #{residual_forward.1}
  #allocation0 [shape = 'u32[]', space=smem, size = 0x4, offset = 0x4, fixed_abs, tag = 'smem constant byte address 0x4 - core index']
  #allocation1 [shape = 'u32[144,128]{1,0:T(1,128)}', space=vmem, size = 0x12000, scoped, tag = 'internal scratch']
  #allocation2 [shape = 'f32[18,24,128]{2,1,0:T(8,128)}', space=vmem, size = 0x36000, scoped, tag = 'scratch operand']
  %s0 = inlined_call_operand.vmem [shape: f32[2,16,16,128], index: 0, kind: input, shape index: {}]
  %s1 = inlined_call_operand.vmem [shape: bf16[384,96], index: 1, kind: input, shape index: {}]
  %s2 = inlined_call_operand.vmem [shape: bf16[32,128], index: 2, kind: input, shape index: {}]
  %s3 = inlined_call_operand.hbm [shape: f32[2,16,16,128], index: 3, kind: output, shape index: {}]
  %s4 = sld [smem:[#allocation0]]
  $region49: #{residual_forward.1} parent=0
    _
  %s6 = ssub.s32 1, %s4
  %s7 = scalar_select 0, %s6, %s4
  $region1: #{residual_forward.1} parent=0
    #allocation3 [shape = 'u8[262144]{0}', space=vmem, size = 0x40000, scoped, tag = 'output window, operand 0']
    #allocation4 [shape = 's32[2]{0}', space=sflag, size = 0x8, scoped, tag = 'scoped memory for residual_forward.1']
    %8 = vsyncpa [#allocation4], 0
    %s9 = scalar_lea.sflag [#allocation4], 1
    %10 = vsyncpa %s9, 0
    loop: start=0, step=1, limit=4
    $region2: #{residual_forward.1} parent=1 // loop_pre_header
      _
    $region3: #{residual_forward.1} parent=1 // loop_header
      %s12 = sphi 0, %s16
      %p13 = scmp.ge.s32.totalorder %s12, 4
      %s19 = sphi 0, %s31
      %s20 = sphi 0, %s27
      %s21 = sphi 0, %s19
      %s22 = sphi 0, %s20
      %s23 = sphi 0, %s21
      %s24 = sphi 0, %s22
      %s34 = sphi 0, %s36
      %s37 = sphi 0, %s34
      %s38 = sphi 0, %s37
      %s54 = sphi 0, %s38
      %s58 = sphi 0, %s58
      %s60 = sphi 0, %s58
      %s61 = sphi 0, %s60
      %s75 = sphi 0, %s61
      %s79 = sphi 0, %s79
      %s81 = sphi 0, %s79
      %s82 = sphi 0, %s81
      %s96 = sphi 0, %s82
      %s104 = sphi 0, %s106
      %s107 = sphi 0, %s104
      %s108 = sphi 0, %s107
      %s124 = sphi 0, %s108
    $region4: #{residual_forward.1} parent=1 // loop_header_branch
      %15 = sbr.rel (%p13) target = $region8
    $region5: #{residual_forward.1} parent=1 // loop_body
      %s17 = ssub.s32 %s12, 1
      %s18 = ssub.s32 %s12, 2
      %s25 = sadd.s32 1, %s20
      %p26 = scmp.ge.s32.totalorder %s25, 1
      %s27 = scalar_select %p26, 0, %s25
      %s28 = sadd.s32 1, %s19
      %s29 = scalar_select %p26, %s28, %s19
      %p30 = scmp.ge.s32.totalorder %s29, 2
      %s31 = scalar_select %p30, 0, %s29
      %s32 = ssub.s32 %s19, %s31
      %p33 = scmp.eq.s32.totalorder %s32, 0
      %s35 = sadd.s32 %s34, 1
      %s36 = scalar_select %p33, %s34, %s35
      %p39 = pneg %p33
      %p40 = scmp.eq.s32.totalorder %s12, 1
      %p41 = por %p39, %p40
      %p42 = scmp.ne.s32.totalorder %s34, %s37
      %p43 = scmp.eq.s32.totalorder %s12, 0
      %p44 = por %p42, %p43
      %p45 = scmp.ne.s32.totalorder %s34, %s37
      %p46 = scmp.eq.s32.totalorder %s17, 1
      %p47 = por %p45, %p46
      %p48 = scmp.ne.s32.totalorder %s37, %s38
      %p49 = scmp.eq.s32.totalorder %s17, 0
      %p50 = por %p48, %p49
      %p51 = scmp.ne.s32.totalorder %s37, %s38
      %p52 = scmp.eq.s32.totalorder %s18, 1
      %p53 = por %p51, %p52
      %p55 = scmp.ne.s32.totalorder %s38, %s54
      %p56 = scmp.eq.s32.totalorder %s18, 0
      %p57 = por %p55, %p56
      %s59 = sadd.s32 %s58, 1
      %p62 = scmp.eq.s32.totalorder %s12, 1
      %p63 = scmp.ne.s32.totalorder %s58, %s60
      %p64 = scmp.eq.s32.totalorder %s12, 0
      %p65 = por %p63, %p64
      %p66 = scmp.ne.s32.totalorder %s58, %s60
      %p67 = scmp.eq.s32.totalorder %s17, 1
      %p68 = por %p66, %p67
      %p69 = scmp.ne.s32.totalorder %s60, %s61
      %p70 = scmp.eq.s32.totalorder %s17, 0
      %p71 = por %p69, %p70
      %p72 = scmp.ne.s32.totalorder %s60, %s61
      %p73 = scmp.eq.s32.totalorder %s18, 1
      %p74 = por %p72, %p73
      %p76 = scmp.ne.s32.totalorder %s61, %s75
      %p77 = scmp.eq.s32.totalorder %s18, 0
      %p78 = por %p76, %p77
      %s80 = sadd.s32 %s79, 1
      %p83 = scmp.eq.s32.totalorder %s12, 1
      %p84 = scmp.ne.s32.totalorder %s79, %s81
      %p85 = scmp.eq.s32.totalorder %s12, 0
      %p86 = por %p84, %p85
      %p87 = scmp.ne.s32.totalorder %s79, %s81
      %p88 = scmp.eq.s32.totalorder %s17, 1
      %p89 = por %p87, %p88
      %p90 = scmp.ne.s32.totalorder %s81, %s82
      %p91 = scmp.eq.s32.totalorder %s17, 0
      %p92 = por %p90, %p91
      %p93 = scmp.ne.s32.totalorder %s81, %s82
      %p94 = scmp.eq.s32.totalorder %s18, 1
      %p95 = por %p93, %p94
      %p97 = scmp.ne.s32.totalorder %s82, %s96
      %p98 = scmp.eq.s32.totalorder %s18, 0
      %p99 = por %p97, %p98
      %s100 = ssub.s32 %s19, %s31
      %s101 = ssub.s32 %s20, %s27
      %s102 = sor.u32 %s100, %s101
      %p103 = scmp.eq.s32.totalorder %s102, 0
      %s105 = sadd.s32 %s104, 1
      %s106 = scalar_select %p103, %s104, %s105
      %p109 = pneg %p103
      %p110 = scmp.eq.s32.totalorder %s12, 1
      %p111 = por %p109, %p110
      %p112 = scmp.ne.s32.totalorder %s104, %s107
      %p113 = scmp.eq.s32.totalorder %s12, 0
      %p114 = por %p112, %p113
      %p115 = scmp.ne.s32.totalorder %s104, %s107
      %p116 = scmp.eq.s32.totalorder %s17, 1
      %p117 = por %p115, %p116
      %p118 = scmp.ne.s32.totalorder %s107, %s108
      %p119 = scmp.eq.s32.totalorder %s17, 0
      %p120 = por %p118, %p119
      %p121 = scmp.ne.s32.totalorder %s107, %s108
      %p122 = scmp.eq.s32.totalorder %s18, 1
      %p123 = por %p121, %p122
      %p125 = scmp.ne.s32.totalorder %s108, %s124
      %p126 = scmp.eq.s32.totalorder %s18, 0
      %p127 = por %p125, %p126
      %p128 = scmp.le.s32.totalorder 1, %s12
      %p129 = scmp.lt.s32.totalorder %s12, 3
      %p130 = pnand %p128, %p129
      %p131 = pneg %p130
      // Predicated region
      $region9: #{residual_forward.1} parent=5 // pred_check
        _
      $region10: #{residual_forward.1} parent=5 // pred_check_branch
        %133 = sbr.rel (%p130) target = $region12
      $region11: #{residual_forward.1} parent=5 // pred_region
        %s134 = ssub.s32 %s12, 1
        // Predicated region
        $region13: #{residual_forward.1} parent=11 // pred_check
          %p135 = pneg %p71
        $region14: #{residual_forward.1} parent=11 // pred_check_branch
          %137 = sbr.rel (%p135) target = $region16
        $region15: #{residual_forward.1} parent=11 // pred_region
          _
        $region16: #{residual_forward.1} parent=11 // pred_fallthru
          _
        // Predicated region
        $region17: #{residual_forward.1} parent=11 // pred_check
          %p138 = pneg %p92
        $region18: #{residual_forward.1} parent=11 // pred_check_branch
          %140 = sbr.rel (%p138) target = $region20
        $region19: #{residual_forward.1} parent=11 // pred_region
          _
        $region20: #{residual_forward.1} parent=11 // pred_fallthru
          _
      $region12: #{residual_forward.1} parent=5 // pred_fallthru
        _
      %p141 = scmp.lt.s32.totalorder %s12, 2
      // Predicated region
      $region21: #{residual_forward.1} parent=5 // pred_check
        %p142 = pneg %p141
      $region22: #{residual_forward.1} parent=5 // pred_check_branch
        %144 = sbr.rel (%p142) target = $region24
      $region23: #{residual_forward.1} parent=5 // pred_region
        // Predicated region
        $region25: #{residual_forward.1} parent=23 // pred_check
          %p145 = pneg %p44
        $region26: #{residual_forward.1} parent=23 // pred_check_branch
          %147 = sbr.rel (%p145) target = $region28
        $region27: #{residual_forward.1} parent=23 // pred_region
          %p148 = scmp.lt.s32.totalorder %s19, 1
          %s149 = scalar_select %p148, %s19, 1
          %s150 = smul.addr %s149, 32
          %s151 = smul.addr %s150, 8
          %s152 = scalar_lea.vmem %s0, %s151
        $region28: #{residual_forward.1} parent=23 // pred_fallthru
          _
      $region24: #{residual_forward.1} parent=5 // pred_fallthru
        _
      %p153 = scmp.le.s32.totalorder 1, %s12
      %p154 = scmp.lt.s32.totalorder %s12, 3
      %p155 = pnand %p153, %p154
      %p156 = pneg %p155
      // Predicated region
      $region29: #{residual_forward.1} parent=5 // pred_check
        _
      $region30: #{residual_forward.1} parent=5 // pred_check_branch
        %158 = sbr.rel (%p155) target = $region32
      $region31: #{residual_forward.1} parent=5 // pred_region
        %s159 = ssub.s32 %s12, 1
        %p160 = scmp.lt.s32.totalorder %s21, 1
        %s161 = scalar_select %p160, %s21, 1
        %s162 = smul.addr %s161, 32
        %s163 = smul.addr %s162, 8
        %s164 = scalar_lea.vmem %s0, %s163
        %p165 = pneg %p50
        %p166 = pneg %p47
        %p167 = pneg %p71
        %p168 = pneg %p68
        %p169 = pneg %p92
        %p170 = pneg %p89
        %p171 = pneg %p120
        %p172 = pneg %p117
        %s173 = sand.u32 %s107, 1
        %s174 = scalar_lea.sflag [#allocation4], %s173
        %s175 = sand.u32 %s107, 1
        %s176 = smul.addr %s175, 256
        %s177 = scalar_lea.vmem [#allocation3], %s176
        %p178 = scmp.lt.s32.totalorder %s21, 1
        %s179 = scalar_select %p178, %s21, 1
        %s180 = smul.addr %s179, 32
        %s181 = smul.addr %s180, 8
        %s182 = scalar_lea.vmem %s0, %s181
        %s183 = smul.u32 16, %s22
        %s185 = smul.u32 %s22, 16
        %p186 = scmp.eq.s32.totalorder %s22, 0
        // Predicated region
        $region33: #{residual_forward.1} parent=31 // pred_check
          %p187 = pneg %p186
        $region34: #{residual_forward.1} parent=31 // pred_check_branch
          %189 = sbr.rel (%p187) target = $region36
        $region35: #{residual_forward.1} parent=31 // pred_region
          %190 = vst [vmem:[#allocation2] sm:$0xff] 0.0
          %191 = vst [vmem:[#allocation2 + $0x8] sm:$0xff] 0.0
          %192 = vst [vmem:[#allocation2 + $0x10] sm:$0xff] 0.0
          %s193 = scalar_lea.vmem [#allocation2], 408
          %194 = vst [vmem:[%s193] sm:$0xff] 0.0
          %195 = vst [vmem:[%s193 + $0x8] sm:$0xff] 0.0
          %196 = vst [vmem:[%s193 + $0x10] sm:$0xff] 0.0
          %197 = vst [vmem:[#allocation2] sm:$0x1] 0.0
          %198 = vst [vmem:[#allocation2 + $0x18] sm:$0x1] 0.0
          %199 = vst [vmem:[#allocation2 + $0x30] sm:$0x1] 0.0
          %200 = vst [vmem:[#allocation2 + $0x48] sm:$0x1] 0.0
          %201 = vst [vmem:[#allocation2 + $0x60] sm:$0x1] 0.0
          %202 = vst [vmem:[#allocation2 + $0x78] sm:$0x1] 0.0
          %203 = vst [vmem:[#allocation2 + $0x90] sm:$0x1] 0.0
          %204 = vst [vmem:[#allocation2 + $0xa8] sm:$0x1] 0.0
          %205 = vst [vmem:[#allocation2 + $0xc0] sm:$0x1] 0.0
          %206 = vst [vmem:[#allocation2 + $0xd8] sm:$0x1] 0.0
          %207 = vst [vmem:[#allocation2 + $0xf0] sm:$0x1] 0.0
          %208 = vst [vmem:[#allocation2 + $0x108] sm:$0x1] 0.0
          %209 = vst [vmem:[#allocation2 + $0x120] sm:$0x1] 0.0
          %210 = vst [vmem:[#allocation2 + $0x138] sm:$0x1] 0.0
          %211 = vst [vmem:[#allocation2 + $0x150] sm:$0x1] 0.0
          %212 = vst [vmem:[#allocation2 + $0x168] sm:$0x1] 0.0
          %213 = vst [vmem:[#allocation2 + $0x180] sm:$0x1] 0.0
          %214 = vst [vmem:[#allocation2 + $0x198] sm:$0x1] 0.0
          %215 = vst [vmem:[#allocation2 + $0x11] sm:$0x7f] 0.0
          %216 = vst [vmem:[#allocation2 + $0x29] sm:$0x7f] 0.0
          %217 = vst [vmem:[#allocation2 + $0x41] sm:$0x7f] 0.0
          %218 = vst [vmem:[#allocation2 + $0x59] sm:$0x7f] 0.0
          %219 = vst [vmem:[#allocation2 + $0x71] sm:$0x7f] 0.0
          %220 = vst [vmem:[#allocation2 + $0x89] sm:$0x7f] 0.0
          %221 = vst [vmem:[#allocation2 + $0xa1] sm:$0x7f] 0.0
          %222 = vst [vmem:[#allocation2 + $0xb9] sm:$0x7f] 0.0
          %223 = vst [vmem:[#allocation2 + $0xd1] sm:$0x7f] 0.0
          %224 = vst [vmem:[#allocation2 + $0xe9] sm:$0x7f] 0.0
          %225 = vst [vmem:[#allocation2 + $0x101] sm:$0x7f] 0.0
          %226 = vst [vmem:[#allocation2 + $0x119] sm:$0x7f] 0.0
          %227 = vst [vmem:[#allocation2 + $0x131] sm:$0x7f] 0.0
          %228 = vst [vmem:[#allocation2 + $0x149] sm:$0x7f] 0.0
          %229 = vst [vmem:[#allocation2 + $0x161] sm:$0x7f] 0.0
          %230 = vst [vmem:[#allocation2 + $0x179] sm:$0x7f] 0.0
          %231 = vst [vmem:[#allocation2 + $0x191] sm:$0x7f] 0.0
          %232 = vst [vmem:[#allocation2 + $0x1a9] sm:$0x7f] 0.0
          %v233 = vld [vmem:[%s182] sm:$0xff]
          %v234 = vld [vmem:[%s182 + $0x8] sm:$0xff]
          %v235 = vld [vmem:[%s182 + $0x10] sm:$0xff]
          %v236 = vld [vmem:[%s182 + $0x18] sm:$0xff]
          %v237 = vld [vmem:[%s182 + $0x20] sm:$0xff]
          %v238 = vld [vmem:[%s182 + $0x28] sm:$0xff]
          %v239 = vld [vmem:[%s182 + $0x30] sm:$0xff]
          %v240 = vld [vmem:[%s182 + $0x38] sm:$0xff]
          %v241 = vld [vmem:[%s182 + $0x40] sm:$0xff]
          %v242 = vld [vmem:[%s182 + $0x48] sm:$0xff]
          %v243 = vld [vmem:[%s182 + $0x50] sm:$0xff]
          %v244 = vld [vmem:[%s182 + $0x58] sm:$0xff]
          %v245 = vld [vmem:[%s182 + $0x60] sm:$0xff]
          %v246 = vld [vmem:[%s182 + $0x68] sm:$0xff]
          %v247 = vld [vmem:[%s182 + $0x70] sm:$0xff]
          %v248 = vld [vmem:[%s182 + $0x78] sm:$0xff]
          %v249 = vld [vmem:[%s182 + $0x80] sm:$0xff]
          %v250 = vld [vmem:[%s182 + $0x88] sm:$0xff]
          %v251 = vld [vmem:[%s182 + $0x90] sm:$0xff]
          %v252 = vld [vmem:[%s182 + $0x98] sm:$0xff]
          %v253 = vld [vmem:[%s182 + $0xa0] sm:$0xff]
          %v254 = vld [vmem:[%s182 + $0xa8] sm:$0xff]
          %v255 = vld [vmem:[%s182 + $0xb0] sm:$0xff]
          %v256 = vld [vmem:[%s182 + $0xb8] sm:$0xff]
          %v257 = vld [vmem:[%s182 + $0xc0] sm:$0xff]
          %v258 = vld [vmem:[%s182 + $0xc8] sm:$0xff]
          %v259 = vld [vmem:[%s182 + $0xd0] sm:$0xff]
          %v260 = vld [vmem:[%s182 + $0xd8] sm:$0xff]
          %v261 = vld [vmem:[%s182 + $0xe0] sm:$0xff]
          %v262 = vld [vmem:[%s182 + $0xe8] sm:$0xff]
          %v263 = vld [vmem:[%s182 + $0xf0] sm:$0xff]
          %v264 = vld [vmem:[%s182 + $0xf8] sm:$0xff]
          %v265 = vmax.f32 %v233, 0.0
          %v266 = vmax.f32 %v234, 0.0
          %v267 = vmax.f32 %v235, 0.0
          %v268 = vmax.f32 %v236, 0.0
          %v269 = vmax.f32 %v237, 0.0
          %v270 = vmax.f32 %v238, 0.0
          %v271 = vmax.f32 %v239, 0.0
          %v272 = vmax.f32 %v240, 0.0
          %v273 = vmax.f32 %v241, 0.0
          %v274 = vmax.f32 %v242, 0.0
          %v275 = vmax.f32 %v243, 0.0
          %v276 = vmax.f32 %v244, 0.0
          %v277 = vmax.f32 %v245, 0.0
          %v278 = vmax.f32 %v246, 0.0
          %v279 = vmax.f32 %v247, 0.0
          %v280 = vmax.f32 %v248, 0.0
          %v281 = vmax.f32 %v249, 0.0
          %v282 = vmax.f32 %v250, 0.0
          %v283 = vmax.f32 %v251, 0.0
          %v284 = vmax.f32 %v252, 0.0
          %v285 = vmax.f32 %v253, 0.0
          %v286 = vmax.f32 %v254, 0.0
          %v287 = vmax.f32 %v255, 0.0
          %v288 = vmax.f32 %v256, 0.0
          %v289 = vmax.f32 %v257, 0.0
          %v290 = vmax.f32 %v258, 0.0
          %v291 = vmax.f32 %v259, 0.0
          %v292 = vmax.f32 %v260, 0.0
          %v293 = vmax.f32 %v261, 0.0
          %v294 = vmax.f32 %v262, 0.0
          %v295 = vmax.f32 %v263, 0.0
          %v296 = vmax.f32 %v264, 0.0
          %s297 = scalar_lea.vmem [#allocation2], 24
          %298 = vst [vmem:[%s297 + $0x1] sm:$0xff] %v265
          %299 = vst [vmem:[%s297 + $0x9] sm:$0xff] %v266
          %300 = vst [vmem:[%s297 + $0x19] sm:$0xff] %v267
          %301 = vst [vmem:[%s297 + $0x21] sm:$0xff] %v268
          %302 = vst [vmem:[%s297 + $0x31] sm:$0xff] %v269
          %303 = vst [vmem:[%s297 + $0x39] sm:$0xff] %v270
          %304 = vst [vmem:[%s297 + $0x49] sm:$0xff] %v271
          %305 = vst [vmem:[%s297 + $0x51] sm:$0xff] %v272
          %306 = vst [vmem:[%s297 + $0x61] sm:$0xff] %v273
          %307 = vst [vmem:[%s297 + $0x69] sm:$0xff] %v274
          %308 = vst [vmem:[%s297 + $0x79] sm:$0xff] %v275
          %309 = vst [vmem:[%s297 + $0x81] sm:$0xff] %v276
          %310 = vst [vmem:[%s297 + $0x91] sm:$0xff] %v277
          %311 = vst [vmem:[%s297 + $0x99] sm:$0xff] %v278
          %312 = vst [vmem:[%s297 + $0xa9] sm:$0xff] %v279
          %313 = vst [vmem:[%s297 + $0xb1] sm:$0xff] %v280
          %314 = vst [vmem:[%s297 + $0xc1] sm:$0xff] %v281
          %315 = vst [vmem:[%s297 + $0xc9] sm:$0xff] %v282
          %316 = vst [vmem:[%s297 + $0xd9] sm:$0xff] %v283
          %317 = vst [vmem:[%s297 + $0xe1] sm:$0xff] %v284
          %318 = vst [vmem:[%s297 + $0xf1] sm:$0xff] %v285
          %319 = vst [vmem:[%s297 + $0xf9] sm:$0xff] %v286
          %320 = vst [vmem:[%s297 + $0x109] sm:$0xff] %v287
          %321 = vst [vmem:[%s297 + $0x111] sm:$0xff] %v288
          %322 = vst [vmem:[%s297 + $0x121] sm:$0xff] %v289
          %323 = vst [vmem:[%s297 + $0x129] sm:$0xff] %v290
          %324 = vst [vmem:[%s297 + $0x139] sm:$0xff] %v291
          %325 = vst [vmem:[%s297 + $0x141] sm:$0xff] %v292
          %326 = vst [vmem:[%s297 + $0x151] sm:$0xff] %v293
          %327 = vst [vmem:[%s297 + $0x159] sm:$0xff] %v294
          %328 = vst [vmem:[%s297 + $0x169] sm:$0xff] %v295
          %329 = vst [vmem:[%s297 + $0x171] sm:$0xff] %v296
        $region36: #{residual_forward.1} parent=31 // pred_fallthru
          _
        %s330 = smul.u32 %s185, 24
        %s331 = scalar_lea.vmem [#allocation2], %s330
        %v332 = vld [vmem:[%s331] sm:$0xff]
        %v333 = vld [vmem:[%s331 + $0x8] sm:$0xff]
        %v334 = vld [vmem:[%s331 + $0x10] sm:$0xff]
        %v335 = vld [vmem:[%s331 + $0x18] sm:$0xff]
        %v336 = vld [vmem:[%s331 + $0x20] sm:$0xff]
        %v337 = vld [vmem:[%s331 + $0x28] sm:$0xff]
        %v338 = vld [vmem:[%s331 + $0x30] sm:$0xff]
        %v339 = vld [vmem:[%s331 + $0x38] sm:$0xff]
        %v340 = vld [vmem:[%s331 + $0x40] sm:$0xff]
        %v341 = vld [vmem:[%s331 + $0x48] sm:$0xff]
        %v342 = vld [vmem:[%s331 + $0x50] sm:$0xff]
        %v343 = vld [vmem:[%s331 + $0x58] sm:$0xff]
        %v344 = vld [vmem:[%s331 + $0x60] sm:$0xff]
        %v345 = vld [vmem:[%s331 + $0x68] sm:$0xff]
        %v346 = vld [vmem:[%s331 + $0x70] sm:$0xff]
        %v347 = vld [vmem:[%s331 + $0x78] sm:$0xff]
        %v348 = vld [vmem:[%s331 + $0x80] sm:$0xff]
        %v349 = vld [vmem:[%s331 + $0x88] sm:$0xff]
        %v350 = vld [vmem:[%s331 + $0x90] sm:$0xff]
        %v351 = vld [vmem:[%s331 + $0x98] sm:$0xff]
        %v352 = vld [vmem:[%s331 + $0xa0] sm:$0xff]
        %v353 = vld [vmem:[%s331 + $0xa8] sm:$0xff]
        %v354 = vld [vmem:[%s331 + $0xb0] sm:$0xff]
        %v355 = vld [vmem:[%s331 + $0xb8] sm:$0xff]
        %v356 = vld [vmem:[%s331 + $0xc0] sm:$0xff]
        %v357 = vld [vmem:[%s331 + $0xc8] sm:$0xff]
        %v358 = vld [vmem:[%s331 + $0xd0] sm:$0xff]
        %v359 = vld [vmem:[%s331 + $0xd8] sm:$0xff]
        %v360 = vld [vmem:[%s331 + $0xe0] sm:$0xff]
        %v361 = vld [vmem:[%s331 + $0xe8] sm:$0xff]
        %v362 = vld [vmem:[%s331 + $0xf0] sm:$0xff]
        %v363 = vld [vmem:[%s331 + $0xf8] sm:$0xff]
        %v364 = vld [vmem:[%s331 + $0x100] sm:$0xff]
        %v365 = vld [vmem:[%s331 + $0x108] sm:$0xff]
        %v366 = vld [vmem:[%s331 + $0x110] sm:$0xff]
        %v367 = vld [vmem:[%s331 + $0x118] sm:$0xff]
        %v368 = vld [vmem:[%s331 + $0x120] sm:$0xff]
        %v369 = vld [vmem:[%s331 + $0x128] sm:$0xff]
        %v370 = vld [vmem:[%s331 + $0x130] sm:$0xff]
        %v371 = vld [vmem:[%s331 + $0x138] sm:$0xff]
        %v372 = vld [vmem:[%s331 + $0x140] sm:$0xff]
        %v373 = vld [vmem:[%s331 + $0x148] sm:$0xff]
        %v374 = vld [vmem:[%s331 + $0x150] sm:$0xff]
        %v375 = vld [vmem:[%s331 + $0x158] sm:$0xff]
        %v376 = vld [vmem:[%s331 + $0x160] sm:$0xff]
        %v377 = vld [vmem:[%s331 + $0x168] sm:$0xff]
        %v378 = vld [vmem:[%s331 + $0x170] sm:$0xff]
        %v379 = vld [vmem:[%s331 + $0x178] sm:$0xff]
        %v380 = vld [vmem:[%s331 + $0x180] sm:$0xff]
        %v381 = vld [vmem:[%s331 + $0x188] sm:$0xff]
        %v382 = vld [vmem:[%s331 + $0x190] sm:$0xff]
        %v383 = vld [vmem:[%s331 + $0x198] sm:$0xff]
        %v384 = vld [vmem:[%s331 + $0x1a0] sm:$0xff]
        %v385 = vld [vmem:[%s331 + $0x1a8] sm:$0xff]
        %v386 = vpack.c.bf16 %v333, %v332
        %v387 = vpack.c.bf16 %v334, %v334
        %v388 = vpack.c.bf16 %v336, %v335
        %v389 = vpack.c.bf16 %v337, %v337
        %v390 = vpack.c.bf16 %v339, %v338
        %v391 = vpack.c.bf16 %v340, %v340
        %v392 = vpack.c.bf16 %v342, %v341
        %v393 = vpack.c.bf16 %v343, %v343
        %v394 = vpack.c.bf16 %v345, %v344
        %v395 = vpack.c.bf16 %v346, %v346
        %v396 = vpack.c.bf16 %v348, %v347
        %v397 = vpack.c.bf16 %v349, %v349
        %v398 = vpack.c.bf16 %v351, %v350
        %v399 = vpack.c.bf16 %v352, %v352
        %v400 = vpack.c.bf16 %v354, %v353
        %v401 = vpack.c.bf16 %v355, %v355
        %v402 = vpack.c.bf16 %v357, %v356
        %v403 = vpack.c.bf16 %v358, %v358
        %v404 = vpack.c.bf16 %v360, %v359
        %v405 = vpack.c.bf16 %v361, %v361
        %v406 = vpack.c.bf16 %v363, %v362
        %v407 = vpack.c.bf16 %v364, %v364
        %v408 = vpack.c.bf16 %v366, %v365
        %v409 = vpack.c.bf16 %v367, %v367
        %v410 = vpack.c.bf16 %v369, %v368
        %v411 = vpack.c.bf16 %v370, %v370
        %v412 = vpack.c.bf16 %v372, %v371
        %v413 = vpack.c.bf16 %v373, %v373
        %v414 = vpack.c.bf16 %v375, %v374
        %v415 = vpack.c.bf16 %v376, %v376
        %v416 = vpack.c.bf16 %v378, %v377
        %v417 = vpack.c.bf16 %v379, %v379
        %v418 = vpack.c.bf16 %v381, %v380
        %v419 = vpack.c.bf16 %v382, %v382
        %v420 = vpack.c.bf16 %v384, %v383
        %v421 = vpack.c.bf16 %v385, %v385
        %v458 = vunpack.c.l.b16 %v386
        %v459 = vunpack.c.l.b16 %v388
        %v460 = vunpack.c.l.b16 %v390
        %v461 = vunpack.c.h.b16 %v386
        %v462 = vunpack.c.h.b16 %v388
        %v463 = vunpack.c.h.b16 %v390
        %v464 = vunpack.c.l.b16 %v387
        %v465 = vunpack.c.l.b16 %v389
        %v466 = vunpack.c.l.b16 %v391
        %v467 = vunpack.c.l.b16 %v392
        %v468 = vunpack.c.h.b16 %v392
        %v469 = vunpack.c.l.b16 %v393
        %v470 = vunpack.c.l.b16 %v394
        %v471 = vunpack.c.h.b16 %v394
        %v472 = vunpack.c.l.b16 %v395
        %v473 = vunpack.c.l.b16 %v396
        %v474 = vunpack.c.h.b16 %v396
        %v475 = vunpack.c.l.b16 %v397
        %v476 = vunpack.c.l.b16 %v398
        %v477 = vunpack.c.h.b16 %v398
        %v478 = vunpack.c.l.b16 %v399
        %v479 = vunpack.c.l.b16 %v400
        %v480 = vunpack.c.h.b16 %v400
        %v481 = vunpack.c.l.b16 %v401
        %v482 = vunpack.c.l.b16 %v402
        %v483 = vunpack.c.h.b16 %v402
        %v484 = vunpack.c.l.b16 %v403
        %v485 = vunpack.c.l.b16 %v404
        %v486 = vunpack.c.h.b16 %v404
        %v487 = vunpack.c.l.b16 %v405
        %v488 = vunpack.c.l.b16 %v406
        %v489 = vunpack.c.h.b16 %v406
        %v490 = vunpack.c.l.b16 %v407
        %v491 = vunpack.c.l.b16 %v408
        %v492 = vunpack.c.h.b16 %v408
        %v493 = vunpack.c.l.b16 %v409
        %v494 = vunpack.c.l.b16 %v410
        %v495 = vunpack.c.h.b16 %v410
        %v496 = vunpack.c.l.b16 %v411
        %v497 = vunpack.c.l.b16 %v412
        %v498 = vunpack.c.h.b16 %v412
        %v499 = vunpack.c.l.b16 %v413
        %v500 = vunpack.c.l.b16 %v414
        %v501 = vunpack.c.h.b16 %v414
        %v502 = vunpack.c.l.b16 %v415
        %v503 = vunpack.c.l.b16 %v416
        %v504 = vunpack.c.h.b16 %v416
        %v505 = vunpack.c.l.b16 %v417
        %v506 = vunpack.c.l.b16 %v418
        %v507 = vunpack.c.h.b16 %v418
        %v508 = vunpack.c.l.b16 %v419
        %v509 = vunpack.c.l.b16 %v420
        %v510 = vunpack.c.h.b16 %v420
        %v511 = vunpack.c.l.b16 %v421
        %v512 = vld [vmem:[%s1] sm:$0xf]
        %v513 = vld [vmem:[%s1 + $0x4] sm:$0xf]
        %v514 = vld [vmem:[%s1 + $0x8] sm:$0xf]
        %v515 = vld [vmem:[%s1 + $0xc] sm:$0xf]
        %v516 = vld [vmem:[%s1 + $0x10] sm:$0xf]
        %v517 = vld [vmem:[%s1 + $0x14] sm:$0xf]
        %v518 = vld [vmem:[%s1 + $0x18] sm:$0xf]
        %v519 = vld [vmem:[%s1 + $0x1c] sm:$0xf]
        %v520 = vld [vmem:[%s1 + $0x20] sm:$0xf]
        %v521 = vld [vmem:[%s1 + $0x24] sm:$0xf]
        %v522 = vld [vmem:[%s1 + $0x28] sm:$0xf]
        %v523 = vld [vmem:[%s1 + $0x2c] sm:$0xf]
        %v524 = vld [vmem:[%s1 + $0x30] sm:$0xf]
        %v525 = vld [vmem:[%s1 + $0x34] sm:$0xf]
        %v526 = vld [vmem:[%s1 + $0x38] sm:$0xf]
        %v527 = vld [vmem:[%s1 + $0x3c] sm:$0xf]
        %v528 = vld [vmem:[%s1 + $0x40] sm:$0xf]
        %v529 = vld [vmem:[%s1 + $0x44] sm:$0xf]
        %v530 = vld [vmem:[%s1 + $0x48] sm:$0xf]
        %v531 = vld [vmem:[%s1 + $0x4c] sm:$0xf]
        %v532 = vld [vmem:[%s1 + $0x50] sm:$0xf]
        %v533 = vld [vmem:[%s1 + $0x54] sm:$0xf]
        %v534 = vld [vmem:[%s1 + $0x58] sm:$0xf]
        %v535 = vld [vmem:[%s1 + $0x5c] sm:$0xf]
        %v536 = vld [vmem:[%s1 + $0x60] sm:$0xf]
        %v537 = vld [vmem:[%s1 + $0x64] sm:$0xf]
        %v538 = vld [vmem:[%s1 + $0x68] sm:$0xf]
        %v539 = vld [vmem:[%s1 + $0x6c] sm:$0xf]
        %v540 = vld [vmem:[%s1 + $0x70] sm:$0xf]
        %v541 = vld [vmem:[%s1 + $0x74] sm:$0xf]
        %v542 = vld [vmem:[%s1 + $0x78] sm:$0xf]
        %v543 = vld [vmem:[%s1 + $0x7c] sm:$0xf]
        %v544 = vld [vmem:[%s1 + $0x80] sm:$0xf]
        %v545 = vld [vmem:[%s1 + $0x84] sm:$0xf]
        %v546 = vld [vmem:[%s1 + $0x88] sm:$0xf]
        %v547 = vld [vmem:[%s1 + $0x8c] sm:$0xf]
        %v548 = vld [vmem:[%s1 + $0x90] sm:$0xf]
        %v549 = vld [vmem:[%s1 + $0x94] sm:$0xf]
        %v550 = vld [vmem:[%s1 + $0x98] sm:$0xf]
        %v551 = vld [vmem:[%s1 + $0x9c] sm:$0xf]
        %v552 = vld [vmem:[%s1 + $0xa0] sm:$0xf]
        %v553 = vld [vmem:[%s1 + $0xa4] sm:$0xf]
        %v554 = vld [vmem:[%s1 + $0xa8] sm:$0xf]
        %v555 = vld [vmem:[%s1 + $0xac] sm:$0xf]
        %v556 = vld [vmem:[%s1 + $0xb0] sm:$0xf]
        %v557 = vld [vmem:[%s1 + $0xb4] sm:$0xf]
        %v558 = vld [vmem:[%s1 + $0xb8] sm:$0xf]
        %v559 = vld [vmem:[%s1 + $0xbc] sm:$0xf]
        %v560 = vpack.c.b16 %v461, %v458
        %v561 = vpack.c.b16 %v462, %v459
        %v562 = vpack.c.b16 %v463, %v460
        %v563 = vpack.c.b16 %v459, %v464
        %v564 = vpack.c.b16 %v460, %v465
        %v565 = vpack.c.b16 %v467, %v466
        %v566 = vpack.c.b16 %v465, %v462
        %v567 = vpack.c.b16 %v466, %v463
        %v568 = vpack.c.b16 %v469, %v468
        %v569 = vpack.c.b16 %v468, %v467
        %v570 = vpack.c.b16 %v471, %v470
        %v571 = vpack.c.b16 %v470, %v469
        %v572 = vpack.c.b16 %v473, %v472
        %v573 = vpack.c.b16 %v472, %v471
        %v574 = vpack.c.b16 %v475, %v474
        %v575 = vpack.c.b16 %v474, %v473
        %v576 = vpack.c.b16 %v477, %v476
        %v577 = vpack.c.b16 %v476, %v475
        %v578 = vpack.c.b16 %v479, %v478
        %v579 = vpack.c.b16 %v478, %v477
        %v580 = vpack.c.b16 %v481, %v480
        %v581 = vpack.c.b16 %v480, %v479
        %v582 = vpack.c.b16 %v483, %v482
        %v583 = vpack.c.b16 %v482, %v481
        %v584 = vpack.c.b16 %v485, %v484
        %v585 = vpack.c.b16 %v484, %v483
        %v586 = vpack.c.b16 %v487, %v486
        %v587 = vpack.c.b16 %v486, %v485
        %v588 = vpack.c.b16 %v489, %v488
        %v589 = vpack.c.b16 %v488, %v487
        %v590 = vpack.c.b16 %v491, %v490
        %v591 = vpack.c.b16 %v490, %v489
        %v592 = vpack.c.b16 %v493, %v492
        %v593 = vpack.c.b16 %v492, %v491
        %v594 = vpack.c.b16 %v495, %v494
        %v595 = vpack.c.b16 %v494, %v493
        %v596 = vpack.c.b16 %v497, %v496
        %v597 = vpack.c.b16 %v496, %v495
        %v598 = vpack.c.b16 %v499, %v498
        %v599 = vpack.c.b16 %v498, %v497
        %v600 = vpack.c.b16 %v501, %v500
        %v601 = vpack.c.b16 %v500, %v499
        %v602 = vpack.c.b16 %v503, %v502
        %v603 = vpack.c.b16 %v502, %v501
        %v604 = vpack.c.b16 %v505, %v504
        %v605 = vpack.c.b16 %v504, %v503
        %v606 = vpack.c.b16 %v507, %v506
        %v607 = vpack.c.b16 %v506, %v505
        %v608 = vpack.c.b16 %v509, %v508
        %v609 = vpack.c.b16 %v508, %v507
        %v610 = vpack.c.b16 %v511, %v510
        %v710 = vunpack.c.l.b16 %v512
        %v711 = vunpack.c.l.b16 %v513
        %v712 = vunpack.c.l.b16 %v514
        %v713 = vunpack.c.l.b16 %v515
        %v714 = vunpack.c.l.b16 %v516
        %v715 = vunpack.c.l.b16 %v517
        %v716 = vunpack.c.l.b16 %v518
        %v717 = vunpack.c.l.b16 %v519
        %v718 = vunpack.c.l.b16 %v520
        %v719 = vunpack.c.l.b16 %v521
        %v720 = vunpack.c.l.b16 %v522
        %v721 = vunpack.c.l.b16 %v523
        %v722 = vunpack.c.l.b16 %v524
        %v723 = vunpack.c.l.b16 %v525
        %v724 = vunpack.c.l.b16 %v526
        %v725 = vunpack.c.l.b16 %v527
        %v726 = vunpack.c.l.b16 %v528
        %v727 = vunpack.c.l.b16 %v529
        %v728 = vunpack.c.l.b16 %v530
        %v729 = vunpack.c.l.b16 %v531
        %v730 = vunpack.c.l.b16 %v532
        %v731 = vunpack.c.l.b16 %v533
        %v732 = vunpack.c.l.b16 %v534
        %v733 = vunpack.c.l.b16 %v535
        %v734 = vunpack.c.l.b16 %v536
        %v735 = vunpack.c.l.b16 %v537
        %v736 = vunpack.c.l.b16 %v538
        %v737 = vunpack.c.l.b16 %v539
        %v738 = vunpack.c.l.b16 %v540
        %v739 = vunpack.c.l.b16 %v541
        %v740 = vunpack.c.l.b16 %v542
        %v741 = vunpack.c.l.b16 %v543
        %v742 = vunpack.c.l.b16 %v544
        %v743 = vunpack.c.l.b16 %v545
        %v744 = vunpack.c.l.b16 %v546
        %v745 = vunpack.c.l.b16 %v547
        %v746 = vunpack.c.l.b16 %v548
        %v747 = vunpack.c.l.b16 %v549
        %v748 = vunpack.c.l.b16 %v550
        %v749 = vunpack.c.l.b16 %v551
        %v750 = vunpack.c.l.b16 %v552
        %v751 = vunpack.c.l.b16 %v553
        %v752 = vunpack.c.l.b16 %v554
        %v753 = vunpack.c.l.b16 %v555
        %v754 = vunpack.c.l.b16 %v556
        %v755 = vunpack.c.l.b16 %v557
        %v756 = vunpack.c.l.b16 %v558
        %v757 = vunpack.c.l.b16 %v559
        %v758 = vpack.c.b16 %v711, %v710
        %v759 = vpack.c.b16 %v713, %v712
        %v760 = vpack.c.b16 %v715, %v714
        %v761 = vpack.c.b16 %v717, %v716
        %v762 = vpack.c.b16 %v719, %v718
        %v763 = vpack.c.b16 %v721, %v720
        %v764 = vpack.c.b16 %v723, %v722
        %v765 = vpack.c.b16 %v725, %v724
        %v766 = vpack.c.b16 %v727, %v726
        %v767 = vpack.c.b16 %v729, %v728
        %v768 = vpack.c.b16 %v731, %v730
        %v769 = vpack.c.b16 %v733, %v732
        %v770 = vpack.c.b16 %v735, %v734
        %v771 = vpack.c.b16 %v737, %v736
        %v772 = vpack.c.b16 %v739, %v738
        %v773 = vpack.c.b16 %v741, %v740
        %v774 = vpack.c.b16 %v743, %v742
        %v775 = vpack.c.b16 %v745, %v744
        %v776 = vpack.c.b16 %v747, %v746
        %v777 = vpack.c.b16 %v749, %v748
        %v778 = vpack.c.b16 %v751, %v750
        %v779 = vpack.c.b16 %v753, %v752
        %v780 = vpack.c.b16 %v755, %v754
        %v781 = vpack.c.b16 %v757, %v756
        %806 = vmatprep.subr.bf16.mxu0 0
        %807 = vmatpush1.bf16.msra.mxu0 %v758
        %808 = vmatprep.subr.bf16.mxu0 0
        %809 = vmatpush1.bf16.msra.mxu0 %v759
        %810 = vmatprep.subr.bf16.mxu0 0
        %811 = vmatpush1.bf16.msra.mxu0 %v760
        %812 = vmatprep.subr.bf16.mxu0 0
        %813 = vmatpush1.bf16.msra.mxu0 %v761
        %814 = vmatprep.subr.bf16.mxu0 0
        %815 = vmatpush1.bf16.msra.mxu0 %v762
        %816 = vmatprep.subr.bf16.mxu0 0
        %817 = vmatpush1.bf16.msra.mxu0 %v763
        %818 = vmatprep.subr.bf16.mxu0 0
        %819 = vmatpush1.bf16.msra.mxu0 %v764
        %820 = vmatprep.subr.bf16.mxu0 0
        %821 = vmatpush1.bf16.msra.mxu0 %v765
        %822 = vmatprep.subr.bf16.mxu0 0
        %823 = vmatpush1.bf16.msra.mxu0 %v766
        %824 = vmatprep.subr.bf16.mxu0 0
        %825 = vmatpush1.bf16.msra.mxu0 %v767
        %826 = vmatprep.subr.bf16.mxu0 0
        %827 = vmatpush1.bf16.msra.mxu0 %v768
        %828 = vmatprep.subr.bf16.mxu0 0
        %829 = vmatpush1.bf16.msra.mxu0 %v769
        %830 = vmatprep.subr.bf16.mxu0 0
        %831 = vmatpush1.bf16.msra.mxu0 %v770
        %832 = vmatprep.subr.bf16.mxu0 0
        %833 = vmatpush1.bf16.msra.mxu0 %v771
        %834 = vmatprep.subr.bf16.mxu0 0
        %835 = vmatpush1.bf16.msra.mxu0 %v772
        %836 = vmatprep.subr.bf16.mxu0 0
        %837 = vmatpush1.bf16.msra.mxu0 %v773
        %838 = vmatprep.mubr.bf16.mxu0 %v561
        %839 = vmatmul.mubr.bf16.gmra.mrb[0].mxu0 %v560
        %v840 = vpop.f32.mrb[0].mxu0
        %v841 = vadd.f32 0.0, %v840
        %v842 = vpop.f32.mrb[0].mxu0
        %v843 = vpop.f32.mrb[0].mxu0
        %v844 = vadd.f32 0.0, %v843
        %v845 = vpop.f32.mrb[0].mxu0
        %846 = vmatprep.mubr.bf16.mxu0 %v564
        %847 = vmatmul.mubr.bf16.gmra.mrb[0].mxu0 %v563
        %v848 = vpop.f32.mrb[0].mxu0
        %v849 = vadd.f32 0.0, %v848
        %v850 = vpop.f32.mrb[0].mxu0
        %v851 = vpop.f32.mrb[0].mxu0
        %v852 = vadd.f32 0.0, %v851
        %v853 = vpop.f32.mrb[0].mxu0
        %854 = vmatprep.mubr.bf16.mxu0 %v567
        %855 = vmatmul.mubr.bf16.gmra.mrb[0].mxu0 %v566
        %v856 = vpop.f32.mrb[0].mxu0
        %v857 = vadd.f32 0.0, %v856
        %v858 = vpop.f32.mrb[0].mxu0
        %v859 = vpop.f32.mrb[0].mxu0
        %v860 = vadd.f32 0.0, %v859
        %v861 = vpop.f32.mrb[0].mxu0
        %862 = vmatprep.mubr.bf16.mxu0 %v569
        %863 = vmatmul.mubr.bf16.gmra.mrb[0].mxu0 %v562
        %v864 = vpop.f32.mrb[0].mxu0
        %v865 = vadd.f32 0.0, %v864
        %v866 = vpop.f32.mrb[0].mxu0
        %v867 = vpop.f32.mrb[0].mxu0
        %v868 = vadd.f32 0.0, %v867
        %v869 = vpop.f32.mrb[0].mxu0
        %870 = vmatprep.mubr.bf16.mxu0 %v571
        %871 = vmatmul.mubr.bf16.gmra.mrb[0].mxu0 %v565
        %v872 = vpop.f32.mrb[0].mxu0
        %v873 = vadd.f32 0.0, %v872
        %v874 = vpop.f32.mrb[0].mxu0
        %v875 = vpop.f32.mrb[0].mxu0
        %v876 = vadd.f32 0.0, %v875
        %v877 = vpop.f32.mrb[0].mxu0
        %878 = vmatprep.mubr.bf16.mxu0 %v573
        %879 = vmatmul.mubr.bf16.gmra.mrb[0].mxu0 %v568
        %v880 = vpop.f32.mrb[0].mxu0
        %v881 = vadd.f32 0.0, %v880
        %v882 = vpop.f32.mrb[0].mxu0
        %v883 = vpop.f32.mrb[0].mxu0
        %v884 = vadd.f32 0.0, %v883
        %v885 = vpop.f32.mrb[0].mxu0
        %886 = vmatprep.mubr.bf16.mxu0 %v575
        %887 = vmatmul.mubr.bf16.gmra.mrb[0].mxu0 %v570
        %v888 = vpop.f32.mrb[0].mxu0
        %v889 = vadd.f32 0.0, %v888
        %v890 = vpop.f32.mrb[0].mxu0
        %v891 = vpop.f32.mrb[0].mxu0
        %v892 = vadd.f32 0.0, %v891
        %v893 = vpop.f32.mrb[0].mxu0
        %894 = vmatprep.mubr.bf16.mxu0 %v577
        %895 = vmatmul.mubr.bf16.gmra.mrb[0].mxu0 %v572
        %v896 = vpop.f32.mrb[0].mxu0
        %v897 = vadd.f32 0.0, %v896
        %v898 = vpop.f32.mrb[0].mxu0
        %v899 = vpop.f32.mrb[0].mxu0
        %v900 = vadd.f32 0.0, %v899
        %v901 = vpop.f32.mrb[0].mxu0
        %902 = vmatprep.mubr.bf16.mxu0 %v579
        %903 = vmatmul.mubr.bf16.gmra.mrb[0].mxu0 %v574
        %v904 = vpop.f32.mrb[0].mxu0
        %v905 = vadd.f32 0.0, %v904
        %v906 = vpop.f32.mrb[0].mxu0
        %v907 = vpop.f32.mrb[0].mxu0
        %v908 = vadd.f32 0.0, %v907
        %v909 = vpop.f32.mrb[0].mxu0
        %910 = vmatprep.mubr.bf16.mxu0 %v581
        %911 = vmatmul.mubr.bf16.gmra.mrb[0].mxu0 %v576
        %v912 = vpop.f32.mrb[0].mxu0
        %v913 = vadd.f32 0.0, %v912
        %v914 = vpop.f32.mrb[0].mxu0
        %v915 = vpop.f32.mrb[0].mxu0
        %v916 = vadd.f32 0.0, %v915
        %v917 = vpop.f32.mrb[0].mxu0
        %918 = vmatprep.mubr.bf16.mxu0 %v583
        %919 = vmatmul.mubr.bf16.gmra.mrb[0].mxu0 %v578
        %v920 = vpop.f32.mrb[0].mxu0
        %v921 = vadd.f32 0.0, %v920
        %v922 = vpop.f32.mrb[0].mxu0
        %v923 = vpop.f32.mrb[0].mxu0
        %v924 = vadd.f32 0.0, %v923
        %v925 = vpop.f32.mrb[0].mxu0
        %926 = vmatprep.mubr.bf16.mxu0 %v585
        %927 = vmatmul.mubr.bf16.gmra.mrb[0].mxu0 %v580
        %v928 = vpop.f32.mrb[0].mxu0
        %v929 = vadd.f32 0.0, %v928
        %v930 = vpop.f32.mrb[0].mxu0
        %v931 = vpop.f32.mrb[0].mxu0
        %v932 = vadd.f32 0.0, %v931
        %v933 = vpop.f32.mrb[0].mxu0
        %934 = vmatprep.mubr.bf16.mxu0 %v587
        %935 = vmatmul.mubr.bf16.gmra.mrb[0].mxu0 %v582
        %v936 = vpop.f32.mrb[0].mxu0
        %v937 = vadd.f32 0.0, %v936
        %v938 = vpop.f32.mrb[0].mxu0
        %v939 = vpop.f32.mrb[0].mxu0
        %v940 = vadd.f32 0.0, %v939
        %v941 = vpop.f32.mrb[0].mxu0
        %942 = vmatprep.mubr.bf16.mxu0 %v589
        %943 = vmatmul.mubr.bf16.gmra.mrb[0].mxu0 %v584
        %v944 = vpop.f32.mrb[0].mxu0
        %v945 = vadd.f32 0.0, %v944
        %v946 = vpop.f32.mrb[0].mxu0
        %v947 = vpop.f32.mrb[0].mxu0
        %v948 = vadd.f32 0.0, %v947
        %v949 = vpop.f32.mrb[0].mxu0
        %950 = vmatprep.mubr.bf16.mxu0 %v591
        %951 = vmatmul.mubr.bf16.gmra.mrb[0].mxu0 %v586
        %v952 = vpop.f32.mrb[0].mxu0
        %v953 = vadd.f32 0.0, %v952
        %v954 = vpop.f32.mrb[0].mxu0
        %v955 = vpop.f32.mrb[0].mxu0
        %v956 = vadd.f32 0.0, %v955
        %v957 = vpop.f32.mrb[0].mxu0
        %958 = vmatprep.mubr.bf16.mxu0 %v593
        %959 = vmatmul.mubr.bf16.gmra.mrb[0].mxu0 %v588
        %v960 = vpop.f32.mrb[0].mxu0
        %v961 = vadd.f32 0.0, %v960
        %v962 = vpop.f32.mrb[0].mxu0
        %v963 = vpop.f32.mrb[0].mxu0
        %v964 = vadd.f32 0.0, %v963
        %v965 = vpop.f32.mrb[0].mxu0
        %966 = vmatprep.mubr.bf16.mxu0 %v595
        %967 = vmatmul.mubr.bf16.gmra.mrb[0].mxu0 %v590
        %v968 = vpop.f32.mrb[0].mxu0
        %v969 = vadd.f32 0.0, %v968
        %v970 = vpop.f32.mrb[0].mxu0
        %v971 = vpop.f32.mrb[0].mxu0
        %v972 = vadd.f32 0.0, %v971
        %v973 = vpop.f32.mrb[0].mxu0
        %974 = vmatprep.mubr.bf16.mxu0 %v597
        %975 = vmatmul.mubr.bf16.gmra.mrb[0].mxu0 %v592
        %v976 = vpop.f32.mrb[0].mxu0
        %v977 = vadd.f32 0.0, %v976
        %v978 = vpop.f32.mrb[0].mxu0
        %v979 = vpop.f32.mrb[0].mxu0
        %v980 = vadd.f32 0.0, %v979
        %v981 = vpop.f32.mrb[0].mxu0
        %982 = vmatprep.mubr.bf16.mxu0 %v599
        %983 = vmatmul.mubr.bf16.gmra.mrb[0].mxu0 %v594
        %v984 = vpop.f32.mrb[0].mxu0
        %v985 = vadd.f32 0.0, %v984
        %v986 = vpop.f32.mrb[0].mxu0
        %v987 = vpop.f32.mrb[0].mxu0
        %v988 = vadd.f32 0.0, %v987
        %v989 = vpop.f32.mrb[0].mxu0
        %990 = vmatprep.mubr.bf16.mxu0 %v601
        %991 = vmatmul.mubr.bf16.gmra.mrb[0].mxu0 %v596
        %v992 = vpop.f32.mrb[0].mxu0
        %v993 = vadd.f32 0.0, %v992
        %v994 = vpop.f32.mrb[0].mxu0
        %v995 = vpop.f32.mrb[0].mxu0
        %v996 = vadd.f32 0.0, %v995
        %v997 = vpop.f32.mrb[0].mxu0
        %998 = vmatprep.mubr.bf16.mxu0 %v603
        %999 = vmatmul.mubr.bf16.gmra.mrb[0].mxu0 %v598
        %v1000 = vpop.f32.mrb[0].mxu0
        %v1001 = vadd.f32 0.0, %v1000
        %v1002 = vpop.f32.mrb[0].mxu0
        %v1003 = vpop.f32.mrb[0].mxu0
        %v1004 = vadd.f32 0.0, %v1003
        %v1005 = vpop.f32.mrb[0].mxu0
        %1006 = vmatprep.mubr.bf16.mxu0 %v605
        %1007 = vmatmul.mubr.bf16.gmra.mrb[0].mxu0 %v600
        %v1008 = vpop.f32.mrb[0].mxu0
        %v1009 = vadd.f32 0.0, %v1008
        %v1010 = vpop.f32.mrb[0].mxu0
        %v1011 = vpop.f32.mrb[0].mxu0
        %v1012 = vadd.f32 0.0, %v1011
        %v1013 = vpop.f32.mrb[0].mxu0
        %1014 = vmatprep.mubr.bf16.mxu0 %v607
        %1015 = vmatmul.mubr.bf16.gmra.mrb[0].mxu0 %v602
        %v1016 = vpop.f32.mrb[0].mxu0
        %v1017 = vadd.f32 0.0, %v1016
        %v1018 = vpop.f32.mrb[0].mxu0
        %v1019 = vpop.f32.mrb[0].mxu0
        %v1020 = vadd.f32 0.0, %v1019
        %v1021 = vpop.f32.mrb[0].mxu0
        %1022 = vmatprep.mubr.bf16.mxu0 %v609
        %1023 = vmatmul.mubr.bf16.gmra.mrb[0].mxu0 %v604
        %v1024 = vpop.f32.mrb[0].mxu0
        %v1025 = vadd.f32 0.0, %v1024
        %v1026 = vpop.f32.mrb[0].mxu0
        %v1027 = vpop.f32.mrb[0].mxu0
        %v1028 = vadd.f32 0.0, %v1027
        %v1029 = vpop.f32.mrb[0].mxu0
        %1030 = vdwg.mxu0
        %1031 = vmatprep.subr.bf16.mxu0 0
        %1032 = vmatpush1.bf16.msra.mxu0 %v774
        %1033 = vmatprep.subr.bf16.mxu0 0
        %1034 = vmatpush1.bf16.msra.mxu0 %v775
        %1035 = vmatprep.subr.bf16.mxu0 0
        %1036 = vmatpush1.bf16.msra.mxu0 %v776
        %1037 = vmatprep.subr.bf16.mxu0 0
        %1038 = vmatpush1.bf16.msra.mxu0 %v777
        %1039 = vmatprep.subr.bf16.mxu0 0
        %1040 = vmatpush1.bf16.msra.mxu0 %v778
        %1041 = vmatprep.subr.bf16.mxu0 0
        %1042 = vmatpush1.bf16.msra.mxu0 %v779
        %1043 = vmatprep.subr.bf16.mxu0 0
        %1044 = vmatpush1.bf16.msra.mxu0 %v780
        %1045 = vmatprep.subr.bf16.mxu0 0
        %1046 = vmatpush1.bf16.msra.mxu0 %v781
        %1047 = vmatprep.subr.bf16.mxu0 0
        %1048 = vmatpush1.bf16.msra.mxu0 0
        %1049 = vmatprep.subr.bf16.mxu0 0
        %1050 = vmatpush1.bf16.msra.mxu0 0
        %1051 = vmatprep.subr.bf16.mxu0 0
        %1052 = vmatpush1.bf16.msra.mxu0 0
        %1053 = vmatprep.subr.bf16.mxu0 0
        %1054 = vmatpush1.bf16.msra.mxu0 0
        %1055 = vmatprep.subr.bf16.mxu0 0
        %1056 = vmatpush1.bf16.msra.mxu0 0
        %1057 = vmatprep.subr.bf16.mxu0 0
        %1058 = vmatpush1.bf16.msra.mxu0 0
        %1059 = vmatprep.subr.bf16.mxu0 0
        %1060 = vmatpush1.bf16.msra.mxu0 0
        %1061 = vmatprep.subr.bf16.mxu0 0
        %1062 = vmatpush1.bf16.msra.mxu0 0
        %1063 = vmatprep.mubr.bf16.mxu0 0
        %1064 = vmatmul.mubr.bf16.gmra.mrb[0].mxu0 %v562
        %v1065 = vpop.f32.mrb[0].mxu0
        %v1066 = vadd.f32 %v841, %v1065
        %v1067 = vpop.f32.mrb[0].mxu0
        %v1068 = vpop.f32.mrb[0].mxu0
        %v1069 = vadd.f32 %v844, %v1068
        %v1070 = vpop.f32.mrb[0].mxu0
        %1071 = vmatprep.mubr.bf16.mxu0 0
        %1072 = vmatmul.mubr.bf16.gmra.mrb[0].mxu0 %v565
        %v1073 = vpop.f32.mrb[0].mxu0
        %v1074 = vadd.f32 %v849, %v1073
        %v1075 = vpop.f32.mrb[0].mxu0
        %v1076 = vpop.f32.mrb[0].mxu0
        %v1077 = vadd.f32 %v852, %v1076
        %v1078 = vpop.f32.mrb[0].mxu0
        %1079 = vmatprep.mubr.bf16.mxu0 0
        %1080 = vmatmul.mubr.bf16.gmra.mrb[0].mxu0 %v568
        %v1081 = vpop.f32.mrb[0].mxu0
        %v1082 = vadd.f32 %v857, %v1081
        %v1083 = vpop.f32.mrb[0].mxu0
        %v1084 = vpop.f32.mrb[0].mxu0
        %v1085 = vadd.f32 %v860, %v1084
        %v1086 = vpop.f32.mrb[0].mxu0
        %1087 = vmatprep.mubr.bf16.mxu0 0
        %1088 = vmatmul.mubr.bf16.gmra.mrb[0].mxu0 %v570
        %v1089 = vpop.f32.mrb[0].mxu0
        %v1090 = vadd.f32 %v865, %v1089
        %v1091 = vpop.f32.mrb[0].mxu0
        %v1092 = vpop.f32.mrb[0].mxu0
        %v1093 = vadd.f32 %v868, %v1092
        %v1094 = vpop.f32.mrb[0].mxu0
        %1095 = vmatprep.mubr.bf16.mxu0 0
        %1096 = vmatmul.mubr.bf16.gmra.mrb[0].mxu0 %v572
        %v1097 = vpop.f32.mrb[0].mxu0
        %v1098 = vadd.f32 %v873, %v1097
        %v1099 = vpop.f32.mrb[0].mxu0
        %v1100 = vpop.f32.mrb[0].mxu0
        %v1101 = vadd.f32 %v876, %v1100
        %v1102 = vpop.f32.mrb[0].mxu0
        %1103 = vmatprep.mubr.bf16.mxu0 0
        %1104 = vmatmul.mubr.bf16.gmra.mrb[0].mxu0 %v574
        %v1105 = vpop.f32.mrb[0].mxu0
        %v1106 = vadd.f32 %v881, %v1105
        %v1107 = vpop.f32.mrb[0].mxu0
        %v1108 = vpop.f32.mrb[0].mxu0
        %v1109 = vadd.f32 %v884, %v1108
        %v1110 = vpop.f32.mrb[0].mxu0
        %1111 = vmatprep.mubr.bf16.mxu0 0
        %1112 = vmatmul.mubr.bf16.gmra.mrb[0].mxu0 %v576
        %v1113 = vpop.f32.mrb[0].mxu0
        %v1114 = vadd.f32 %v889, %v1113
        %v1115 = vpop.f32.mrb[0].mxu0
        %v1116 = vpop.f32.mrb[0].mxu0
        %v1117 = vadd.f32 %v892, %v1116
        %v1118 = vpop.f32.mrb[0].mxu0
        %1119 = vmatprep.mubr.bf16.mxu0 0
        %1120 = vmatmul.mubr.bf16.gmra.mrb[0].mxu0 %v578
        %v1121 = vpop.f32.mrb[0].mxu0
        %v1122 = vadd.f32 %v897, %v1121
        %v1123 = vpop.f32.mrb[0].mxu0
        %v1124 = vpop.f32.mrb[0].mxu0
        %v1125 = vadd.f32 %v900, %v1124
        %v1126 = vpop.f32.mrb[0].mxu0
        %1127 = vmatprep.mubr.bf16.mxu0 0
        %1128 = vmatmul.mubr.bf16.gmra.mrb[0].mxu0 %v580
        %v1129 = vpop.f32.mrb[0].mxu0
        %v1130 = vadd.f32 %v905, %v1129
        %v1131 = vpop.f32.mrb[0].mxu0
        %v1132 = vpop.f32.mrb[0].mxu0
        %v1133 = vadd.f32 %v908, %v1132
        %v1134 = vpop.f32.mrb[0].mxu0
        %1135 = vmatprep.mubr.bf16.mxu0 0
        %1136 = vmatmul.mubr.bf16.gmra.mrb[0].mxu0 %v582
        %v1137 = vpop.f32.mrb[0].mxu0
        %v1138 = vadd.f32 %v913, %v1137
        %v1139 = vpop.f32.mrb[0].mxu0
        %v1140 = vpop.f32.mrb[0].mxu0
        %v1141 = vadd.f32 %v916, %v1140
        %v1142 = vpop.f32.mrb[0].mxu0
        %1143 = vmatprep.mubr.bf16.mxu0 0
        %1144 = vmatmul.mubr.bf16.gmra.mrb[0].mxu0 %v584
        %v1145 = vpop.f32.mrb[0].mxu0
        %v1146 = vadd.f32 %v921, %v1145
        %v1147 = vpop.f32.mrb[0].mxu0
        %v1148 = vpop.f32.mrb[0].mxu0
        %v1149 = vadd.f32 %v924, %v1148
        %v1150 = vpop.f32.mrb[0].mxu0
        %1151 = vmatprep.mubr.bf16.mxu0 0
        %1152 = vmatmul.mubr.bf16.gmra.mrb[0].mxu0 %v586
        %v1153 = vpop.f32.mrb[0].mxu0
        %v1154 = vadd.f32 %v929, %v1153
        %v1155 = vpop.f32.mrb[0].mxu0
        %v1156 = vpop.f32.mrb[0].mxu0
        %v1157 = vadd.f32 %v932, %v1156
        %v1158 = vpop.f32.mrb[0].mxu0
        %1159 = vmatprep.mubr.bf16.mxu0 0
        %1160 = vmatmul.mubr.bf16.gmra.mrb[0].mxu0 %v588
        %v1161 = vpop.f32.mrb[0].mxu0
        %v1162 = vadd.f32 %v937, %v1161
        %v1163 = vpop.f32.mrb[0].mxu0
        %v1164 = vpop.f32.mrb[0].mxu0
        %v1165 = vadd.f32 %v940, %v1164
        %v1166 = vpop.f32.mrb[0].mxu0
        %1167 = vmatprep.mubr.bf16.mxu0 0
        %1168 = vmatmul.mubr.bf16.gmra.mrb[0].mxu0 %v590
        %v1169 = vpop.f32.mrb[0].mxu0
        %v1170 = vadd.f32 %v945, %v1169
        %v1171 = vpop.f32.mrb[0].mxu0
        %v1172 = vpop.f32.mrb[0].mxu0
        %v1173 = vadd.f32 %v948, %v1172
        %v1174 = vpop.f32.mrb[0].mxu0
        %1175 = vmatprep.mubr.bf16.mxu0 0
        %1176 = vmatmul.mubr.bf16.gmra.mrb[0].mxu0 %v592
        %v1177 = vpop.f32.mrb[0].mxu0
        %v1178 = vadd.f32 %v953, %v1177
        %v1179 = vpop.f32.mrb[0].mxu0
        %v1180 = vpop.f32.mrb[0].mxu0
        %v1181 = vadd.f32 %v956, %v1180
        %v1182 = vpop.f32.mrb[0].mxu0
        %1183 = vmatprep.mubr.bf16.mxu0 0
        %1184 = vmatmul.mubr.bf16.gmra.mrb[0].mxu0 %v594
        %v1185 = vpop.f32.mrb[0].mxu0
        %v1186 = vadd.f32 %v961, %v1185
        %v1187 = vpop.f32.mrb[0].mxu0
        %v1188 = vpop.f32.mrb[0].mxu0
        %v1189 = vadd.f32 %v964, %v1188
        %v1190 = vpop.f32.mrb[0].mxu0
        %1191 = vmatprep.mubr.bf16.mxu0 0
        %1192 = vmatmul.mubr.bf16.gmra.mrb[0].mxu0 %v596
        %v1193 = vpop.f32.mrb[0].mxu0
        %v1194 = vadd.f32 %v969, %v1193
        %v1195 = vpop.f32.mrb[0].mxu0
        %v1196 = vpop.f32.mrb[0].mxu0
        %v1197 = vadd.f32 %v972, %v1196
        %v1198 = vpop.f32.mrb[0].mxu0
        %1199 = vmatprep.mubr.bf16.mxu0 0
        %1200 = vmatmul.mubr.bf16.gmra.mrb[0].mxu0 %v598
        %v1201 = vpop.f32.mrb[0].mxu0
        %v1202 = vadd.f32 %v977, %v1201
        %v1203 = vpop.f32.mrb[0].mxu0
        %v1204 = vpop.f32.mrb[0].mxu0
        %v1205 = vadd.f32 %v980, %v1204
        %v1206 = vpop.f32.mrb[0].mxu0
        %1207 = vmatprep.mubr.bf16.mxu0 0
        %1208 = vmatmul.mubr.bf16.gmra.mrb[0].mxu0 %v600
        %v1209 = vpop.f32.mrb[0].mxu0
        %v1210 = vadd.f32 %v985, %v1209
        %v1211 = vpop.f32.mrb[0].mxu0
        %v1212 = vpop.f32.mrb[0].mxu0
        %v1213 = vadd.f32 %v988, %v1212
        %v1214 = vpop.f32.mrb[0].mxu0
        %1215 = vmatprep.mubr.bf16.mxu0 0
        %1216 = vmatmul.mubr.bf16.gmra.mrb[0].mxu0 %v602
        %v1217 = vpop.f32.mrb[0].mxu0
        %v1218 = vadd.f32 %v993, %v1217
        %v1219 = vpop.f32.mrb[0].mxu0
        %v1220 = vpop.f32.mrb[0].mxu0
        %v1221 = vadd.f32 %v996, %v1220
        %v1222 = vpop.f32.mrb[0].mxu0
        %1223 = vmatprep.mubr.bf16.mxu0 0
        %1224 = vmatmul.mubr.bf16.gmra.mrb[0].mxu0 %v604
        %v1225 = vpop.f32.mrb[0].mxu0
        %v1226 = vadd.f32 %v1001, %v1225
        %v1227 = vpop.f32.mrb[0].mxu0
        %v1228 = vpop.f32.mrb[0].mxu0
        %v1229 = vadd.f32 %v1004, %v1228
        %v1230 = vpop.f32.mrb[0].mxu0
        %1231 = vmatprep.mubr.bf16.mxu0 0
        %1232 = vmatmul.mubr.bf16.gmra.mrb[0].mxu0 %v606
        %v1233 = vpop.f32.mrb[0].mxu0
        %v1234 = vadd.f32 %v1009, %v1233
        %v1235 = vpop.f32.mrb[0].mxu0
        %v1236 = vpop.f32.mrb[0].mxu0
        %v1237 = vadd.f32 %v1012, %v1236
        %v1238 = vpop.f32.mrb[0].mxu0
        %1239 = vmatprep.mubr.bf16.mxu0 0
        %1240 = vmatmul.mubr.bf16.gmra.mrb[0].mxu0 %v608
        %v1241 = vpop.f32.mrb[0].mxu0
        %v1242 = vadd.f32 %v1017, %v1241
        %v1243 = vpop.f32.mrb[0].mxu0
        %v1244 = vpop.f32.mrb[0].mxu0
        %v1245 = vadd.f32 %v1020, %v1244
        %v1246 = vpop.f32.mrb[0].mxu0
        %1247 = vmatprep.mubr.bf16.mxu0 0
        %1248 = vmatmul.mubr.bf16.gmra.mrb[0].mxu0 %v610
        %v1249 = vpop.f32.mrb[0].mxu0
        %v1250 = vadd.f32 %v1025, %v1249
        %v1251 = vpop.f32.mrb[0].mxu0
        %v1252 = vpop.f32.mrb[0].mxu0
        %v1253 = vadd.f32 %v1028, %v1252
        %v1254 = vpop.f32.mrb[0].mxu0
        %1255 = vdwg.mxu0
        %vm1304 = vcmask 1046528
        %v1305 = vrot.slane %v1066, 1
        %v1306 = vrot.slane %v1069, 1
        %v1307 = vsel %vm1304, %v1305, %v1306
        %v1308 = vrot.slane %v1074, 1
        %v1309 = vsel %vm1304, %v1306, %v1308
        %v1310 = vrot.slane %v1077, 1
        %v1311 = vrot.slane %v1082, 1
        %v1312 = vsel %vm1304, %v1310, %v1311
        %v1313 = vrot.slane %v1085, 1
        %v1314 = vsel %vm1304, %v1311, %v1313
        %v1315 = vrot.slane %v1090, 1
        %v1316 = vrot.slane %v1093, 1
        %v1317 = vsel %vm1304, %v1315, %v1316
        %v1318 = vrot.slane %v1098, 1
        %v1319 = vsel %vm1304, %v1316, %v1318
        %v1320 = vrot.slane %v1101, 1
        %v1321 = vrot.slane %v1106, 1
        %v1322 = vsel %vm1304, %v1320, %v1321
        %v1323 = vrot.slane %v1109, 1
        %v1324 = vsel %vm1304, %v1321, %v1323
        %v1325 = vrot.slane %v1114, 1
        %v1326 = vrot.slane %v1117, 1
        %v1327 = vsel %vm1304, %v1325, %v1326
        %v1328 = vrot.slane %v1122, 1
        %v1329 = vsel %vm1304, %v1326, %v1328
        %v1330 = vrot.slane %v1125, 1
        %v1331 = vrot.slane %v1130, 1
        %v1332 = vsel %vm1304, %v1330, %v1331
        %v1333 = vrot.slane %v1133, 1
        %v1334 = vsel %vm1304, %v1331, %v1333
        %v1335 = vrot.slane %v1138, 1
        %v1336 = vrot.slane %v1141, 1
        %v1337 = vsel %vm1304, %v1335, %v1336
        %v1338 = vrot.slane %v1146, 1
        %v1339 = vsel %vm1304, %v1336, %v1338
        %v1340 = vrot.slane %v1149, 1
        %v1341 = vrot.slane %v1154, 1
        %v1342 = vsel %vm1304, %v1340, %v1341
        %v1343 = vrot.slane %v1157, 1
        %v1344 = vsel %vm1304, %v1341, %v1343
        %v1345 = vrot.slane %v1162, 1
        %v1346 = vrot.slane %v1165, 1
        %v1347 = vsel %vm1304, %v1345, %v1346
        %v1348 = vrot.slane %v1170, 1
        %v1349 = vsel %vm1304, %v1346, %v1348
        %v1350 = vrot.slane %v1173, 1
        %v1351 = vrot.slane %v1178, 1
        %v1352 = vsel %vm1304, %v1350, %v1351
        %v1353 = vrot.slane %v1181, 1
        %v1354 = vsel %vm1304, %v1351, %v1353
        %v1355 = vrot.slane %v1186, 1
        %v1356 = vrot.slane %v1189, 1
        %v1357 = vsel %vm1304, %v1355, %v1356
        %v1358 = vrot.slane %v1194, 1
        %v1359 = vsel %vm1304, %v1356, %v1358
        %v1360 = vrot.slane %v1197, 1
        %v1361 = vrot.slane %v1202, 1
        %v1362 = vsel %vm1304, %v1360, %v1361
        %v1363 = vrot.slane %v1205, 1
        %v1364 = vsel %vm1304, %v1361, %v1363
        %v1365 = vrot.slane %v1210, 1
        %v1366 = vrot.slane %v1213, 1
        %v1367 = vsel %vm1304, %v1365, %v1366
        %v1368 = vrot.slane %v1218, 1
        %v1369 = vsel %vm1304, %v1366, %v1368
        %v1370 = vrot.slane %v1221, 1
        %v1371 = vrot.slane %v1226, 1
        %v1372 = vsel %vm1304, %v1370, %v1371
        %v1373 = vrot.slane %v1229, 1
        %v1374 = vsel %vm1304, %v1371, %v1373
        %v1375 = vrot.slane %v1234, 1
        %v1376 = vrot.slane %v1237, 1
        %v1377 = vsel %vm1304, %v1375, %v1376
        %v1378 = vrot.slane %v1242, 1
        %v1379 = vsel %vm1304, %v1376, %v1378
        %v1380 = vrot.slane %v1245, 1
        %v1381 = vrot.slane %v1250, 1
        %v1382 = vsel %vm1304, %v1380, %v1381
        %v1383 = vrot.slane %v1253, 1
        %v1384 = vsel %vm1304, %v1381, %v1383
        %1385 = vrot.lane.b32.xlu0 %v1307, 96
        %v1386 = vpop.permute.xlu0 %1385
        %1387 = vrot.lane.b32.xlu0 %v1309, 96
        %v1388 = vpop.permute.xlu0 %1387
        %1389 = vrot.lane.b32.xlu0 %v1312, 96
        %v1390 = vpop.permute.xlu0 %1389
        %1391 = vrot.lane.b32.xlu0 %v1314, 96
        %v1392 = vpop.permute.xlu0 %1391
        %1393 = vrot.lane.b32.xlu0 %v1317, 96
        %v1394 = vpop.permute.xlu0 %1393
        %1395 = vrot.lane.b32.xlu0 %v1319, 96
        %v1396 = vpop.permute.xlu0 %1395
        %1397 = vrot.lane.b32.xlu0 %v1322, 96
        %v1398 = vpop.permute.xlu0 %1397
        %1399 = vrot.lane.b32.xlu0 %v1324, 96
        %v1400 = vpop.permute.xlu0 %1399
        %1401 = vrot.lane.b32.xlu0 %v1327, 96
        %v1402 = vpop.permute.xlu0 %1401
        %1403 = vrot.lane.b32.xlu0 %v1329, 96
        %v1404 = vpop.permute.xlu0 %1403
        %1405 = vrot.lane.b32.xlu0 %v1332, 96
        %v1406 = vpop.permute.xlu0 %1405
        %1407 = vrot.lane.b32.xlu0 %v1334, 96
        %v1408 = vpop.permute.xlu0 %1407
        %1409 = vrot.lane.b32.xlu0 %v1337, 96
        %v1410 = vpop.permute.xlu0 %1409
        %1411 = vrot.lane.b32.xlu0 %v1339, 96
        %v1412 = vpop.permute.xlu0 %1411
        %1413 = vrot.lane.b32.xlu0 %v1342, 96
        %v1414 = vpop.permute.xlu0 %1413
        %1415 = vrot.lane.b32.xlu0 %v1344, 96
        %v1416 = vpop.permute.xlu0 %1415
        %1417 = vrot.lane.b32.xlu0 %v1347, 96
        %v1418 = vpop.permute.xlu0 %1417
        %1419 = vrot.lane.b32.xlu0 %v1349, 96
        %v1420 = vpop.permute.xlu0 %1419
        %1421 = vrot.lane.b32.xlu0 %v1352, 96
        %v1422 = vpop.permute.xlu0 %1421
        %1423 = vrot.lane.b32.xlu0 %v1354, 96
        %v1424 = vpop.permute.xlu0 %1423
        %1425 = vrot.lane.b32.xlu0 %v1357, 96
        %v1426 = vpop.permute.xlu0 %1425
        %1427 = vrot.lane.b32.xlu0 %v1359, 96
        %v1428 = vpop.permute.xlu0 %1427
        %1429 = vrot.lane.b32.xlu0 %v1362, 96
        %v1430 = vpop.permute.xlu0 %1429
        %1431 = vrot.lane.b32.xlu0 %v1364, 96
        %v1432 = vpop.permute.xlu0 %1431
        %1433 = vrot.lane.b32.xlu0 %v1367, 96
        %v1434 = vpop.permute.xlu0 %1433
        %1435 = vrot.lane.b32.xlu0 %v1369, 96
        %v1436 = vpop.permute.xlu0 %1435
        %1437 = vrot.lane.b32.xlu0 %v1372, 96
        %v1438 = vpop.permute.xlu0 %1437
        %1439 = vrot.lane.b32.xlu0 %v1374, 96
        %v1440 = vpop.permute.xlu0 %1439
        %1441 = vrot.lane.b32.xlu0 %v1377, 96
        %v1442 = vpop.permute.xlu0 %1441
        %1443 = vrot.lane.b32.xlu0 %v1379, 96
        %v1444 = vpop.permute.xlu0 %1443
        %1445 = vrot.lane.b32.xlu0 %v1382, 96
        %v1446 = vpop.permute.xlu0 %1445
        %1447 = vrot.lane.b32.xlu0 %v1384, 96
        %v1448 = vpop.permute.xlu0 %1447
        %v1481 = vadd.f32 %v1066, %v1386
        %v1482 = vadd.f32 %v1069, %v1388
        %v1483 = vadd.f32 %v1077, %v1390
        %v1484 = vadd.f32 %v1082, %v1392
        %v1485 = vadd.f32 %v1090, %v1394
        %v1486 = vadd.f32 %v1093, %v1396
        %v1487 = vadd.f32 %v1101, %v1398
        %v1488 = vadd.f32 %v1106, %v1400
        %v1489 = vadd.f32 %v1114, %v1402
        %v1490 = vadd.f32 %v1117, %v1404
        %v1491 = vadd.f32 %v1125, %v1406
        %v1492 = vadd.f32 %v1130, %v1408
        %v1493 = vadd.f32 %v1138, %v1410
        %v1494 = vadd.f32 %v1141, %v1412
        %v1495 = vadd.f32 %v1149, %v1414
        %v1496 = vadd.f32 %v1154, %v1416
        %v1497 = vadd.f32 %v1162, %v1418
        %v1498 = vadd.f32 %v1165, %v1420
        %v1499 = vadd.f32 %v1173, %v1422
        %v1500 = vadd.f32 %v1178, %v1424
        %v1501 = vadd.f32 %v1186, %v1426
        %v1502 = vadd.f32 %v1189, %v1428
        %v1503 = vadd.f32 %v1197, %v1430
        %v1504 = vadd.f32 %v1202, %v1432
        %v1505 = vadd.f32 %v1210, %v1434
        %v1506 = vadd.f32 %v1213, %v1436
        %v1507 = vadd.f32 %v1221, %v1438
        %v1508 = vadd.f32 %v1226, %v1440
        %v1509 = vadd.f32 %v1234, %v1442
        %v1510 = vadd.f32 %v1237, %v1444
        %v1511 = vadd.f32 %v1245, %v1446
        %v1512 = vadd.f32 %v1250, %v1448
        %vm1513 = vcmask 1045504
        %v1514 = vrot.slane %v1066, 2
        %v1515 = vrot.slane %v1069, 2
        %v1516 = vsel %vm1513, %v1514, %v1515
        %v1517 = vrot.slane %v1074, 2
        %v1518 = vsel %vm1513, %v1515, %v1517
        %v1519 = vrot.slane %v1077, 2
        %v1520 = vrot.slane %v1082, 2
        %v1521 = vsel %vm1513, %v1519, %v1520
        %v1522 = vrot.slane %v1085, 2
        %v1523 = vsel %vm1513, %v1520, %v1522
        %v1524 = vrot.slane %v1090, 2
        %v1525 = vrot.slane %v1093, 2
        %v1526 = vsel %vm1513, %v1524, %v1525
        %v1527 = vrot.slane %v1098, 2
        %v1528 = vsel %vm1513, %v1525, %v1527
        %v1529 = vrot.slane %v1101, 2
        %v1530 = vrot.slane %v1106, 2
        %v1531 = vsel %vm1513, %v1529, %v1530
        %v1532 = vrot.slane %v1109, 2
        %v1533 = vsel %vm1513, %v1530, %v1532
        %v1534 = vrot.slane %v1114, 2
        %v1535 = vrot.slane %v1117, 2
        %v1536 = vsel %vm1513, %v1534, %v1535
        %v1537 = vrot.slane %v1122, 2
        %v1538 = vsel %vm1513, %v1535, %v1537
        %v1539 = vrot.slane %v1125, 2
        %v1540 = vrot.slane %v1130, 2
        %v1541 = vsel %vm1513, %v1539, %v1540
        %v1542 = vrot.slane %v1133, 2
        %v1543 = vsel %vm1513, %v1540, %v1542
        %v1544 = vrot.slane %v1138, 2
        %v1545 = vrot.slane %v1141, 2
        %v1546 = vsel %vm1513, %v1544, %v1545
        %v1547 = vrot.slane %v1146, 2
        %v1548 = vsel %vm1513, %v1545, %v1547
        %v1549 = vrot.slane %v1149, 2
        %v1550 = vrot.slane %v1154, 2
        %v1551 = vsel %vm1513, %v1549, %v1550
        %v1552 = vrot.slane %v1157, 2
        %v1553 = vsel %vm1513, %v1550, %v1552
        %v1554 = vrot.slane %v1162, 2
        %v1555 = vrot.slane %v1165, 2
        %v1556 = vsel %vm1513, %v1554, %v1555
        %v1557 = vrot.slane %v1170, 2
        %v1558 = vsel %vm1513, %v1555, %v1557
        %v1559 = vrot.slane %v1173, 2
        %v1560 = vrot.slane %v1178, 2
        %v1561 = vsel %vm1513, %v1559, %v1560
        %v1562 = vrot.slane %v1181, 2
        %v1563 = vsel %vm1513, %v1560, %v1562
        %v1564 = vrot.slane %v1186, 2
        %v1565 = vrot.slane %v1189, 2
        %v1566 = vsel %vm1513, %v1564, %v1565
        %v1567 = vrot.slane %v1194, 2
        %v1568 = vsel %vm1513, %v1565, %v1567
        %v1569 = vrot.slane %v1197, 2
        %v1570 = vrot.slane %v1202, 2
        %v1571 = vsel %vm1513, %v1569, %v1570
        %v1572 = vrot.slane %v1205, 2
        %v1573 = vsel %vm1513, %v1570, %v1572
        %v1574 = vrot.slane %v1210, 2
        %v1575 = vrot.slane %v1213, 2
        %v1576 = vsel %vm1513, %v1574, %v1575
        %v1577 = vrot.slane %v1218, 2
        %v1578 = vsel %vm1513, %v1575, %v1577
        %v1579 = vrot.slane %v1221, 2
        %v1580 = vrot.slane %v1226, 2
        %v1581 = vsel %vm1513, %v1579, %v1580
        %v1582 = vrot.slane %v1229, 2
        %v1583 = vsel %vm1513, %v1580, %v1582
        %v1584 = vrot.slane %v1234, 2
        %v1585 = vrot.slane %v1237, 2
        %v1586 = vsel %vm1513, %v1584, %v1585
        %v1587 = vrot.slane %v1242, 2
        %v1588 = vsel %vm1513, %v1585, %v1587
        %v1589 = vrot.slane %v1245, 2
        %v1590 = vrot.slane %v1250, 2
        %v1591 = vsel %vm1513, %v1589, %v1590
        %v1592 = vrot.slane %v1253, 2
        %v1593 = vsel %vm1513, %v1590, %v1592
        %1594 = vrot.lane.b32.xlu0 %v1516, 64
        %v1595 = vpop.permute.xlu0 %1594
        %1596 = vrot.lane.b32.xlu0 %v1518, 64
        %v1597 = vpop.permute.xlu0 %1596
        %1598 = vrot.lane.b32.xlu0 %v1521, 64
        %v1599 = vpop.permute.xlu0 %1598
        %1600 = vrot.lane.b32.xlu0 %v1523, 64
        %v1601 = vpop.permute.xlu0 %1600
        %1602 = vrot.lane.b32.xlu0 %v1526, 64
        %v1603 = vpop.permute.xlu0 %1602
        %1604 = vrot.lane.b32.xlu0 %v1528, 64
        %v1605 = vpop.permute.xlu0 %1604
        %1606 = vrot.lane.b32.xlu0 %v1531, 64
        %v1607 = vpop.permute.xlu0 %1606
        %1608 = vrot.lane.b32.xlu0 %v1533, 64
        %v1609 = vpop.permute.xlu0 %1608
        %1610 = vrot.lane.b32.xlu0 %v1536, 64
        %v1611 = vpop.permute.xlu0 %1610
        %1612 = vrot.lane.b32.xlu0 %v1538, 64
        %v1613 = vpop.permute.xlu0 %1612
        %1614 = vrot.lane.b32.xlu0 %v1541, 64
        %v1615 = vpop.permute.xlu0 %1614
        %1616 = vrot.lane.b32.xlu0 %v1543, 64
        %v1617 = vpop.permute.xlu0 %1616
        %1618 = vrot.lane.b32.xlu0 %v1546, 64
        %v1619 = vpop.permute.xlu0 %1618
        %1620 = vrot.lane.b32.xlu0 %v1548, 64
        %v1621 = vpop.permute.xlu0 %1620
        %1622 = vrot.lane.b32.xlu0 %v1551, 64
        %v1623 = vpop.permute.xlu0 %1622
        %1624 = vrot.lane.b32.xlu0 %v1553, 64
        %v1625 = vpop.permute.xlu0 %1624
        %1626 = vrot.lane.b32.xlu0 %v1556, 64
        %v1627 = vpop.permute.xlu0 %1626
        %1628 = vrot.lane.b32.xlu0 %v1558, 64
        %v1629 = vpop.permute.xlu0 %1628
        %1630 = vrot.lane.b32.xlu0 %v1561, 64
        %v1631 = vpop.permute.xlu0 %1630
        %1632 = vrot.lane.b32.xlu0 %v1563, 64
        %v1633 = vpop.permute.xlu0 %1632
        %1634 = vrot.lane.b32.xlu0 %v1566, 64
        %v1635 = vpop.permute.xlu0 %1634
        %1636 = vrot.lane.b32.xlu0 %v1568, 64
        %v1637 = vpop.permute.xlu0 %1636
        %1638 = vrot.lane.b32.xlu0 %v1571, 64
        %v1639 = vpop.permute.xlu0 %1638
        %1640 = vrot.lane.b32.xlu0 %v1573, 64
        %v1641 = vpop.permute.xlu0 %1640
        %1642 = vrot.lane.b32.xlu0 %v1576, 64
        %v1643 = vpop.permute.xlu0 %1642
        %1644 = vrot.lane.b32.xlu0 %v1578, 64
        %v1645 = vpop.permute.xlu0 %1644
        %1646 = vrot.lane.b32.xlu0 %v1581, 64
        %v1647 = vpop.permute.xlu0 %1646
        %1648 = vrot.lane.b32.xlu0 %v1583, 64
        %v1649 = vpop.permute.xlu0 %1648
        %1650 = vrot.lane.b32.xlu0 %v1586, 64
        %v1651 = vpop.permute.xlu0 %1650
        %1652 = vrot.lane.b32.xlu0 %v1588, 64
        %v1653 = vpop.permute.xlu0 %1652
        %1654 = vrot.lane.b32.xlu0 %v1591, 64
        %v1655 = vpop.permute.xlu0 %1654
        %1656 = vrot.lane.b32.xlu0 %v1593, 64
        %v1657 = vpop.permute.xlu0 %1656
        %v1690 = vadd.f32 %v1481, %v1595
        %v1691 = vadd.f32 %v1482, %v1597
        %v1692 = vadd.f32 %v1483, %v1599
        %v1693 = vadd.f32 %v1484, %v1601
        %v1694 = vadd.f32 %v1485, %v1603
        %v1695 = vadd.f32 %v1486, %v1605
        %v1696 = vadd.f32 %v1487, %v1607
        %v1697 = vadd.f32 %v1488, %v1609
        %v1698 = vadd.f32 %v1489, %v1611
        %v1699 = vadd.f32 %v1490, %v1613
        %v1700 = vadd.f32 %v1491, %v1615
        %v1701 = vadd.f32 %v1492, %v1617
        %v1702 = vadd.f32 %v1493, %v1619
        %v1703 = vadd.f32 %v1494, %v1621
        %v1704 = vadd.f32 %v1495, %v1623
        %v1705 = vadd.f32 %v1496, %v1625
        %v1706 = vadd.f32 %v1497, %v1627
        %v1707 = vadd.f32 %v1498, %v1629
        %v1708 = vadd.f32 %v1499, %v1631
        %v1709 = vadd.f32 %v1500, %v1633
        %v1710 = vadd.f32 %v1501, %v1635
        %v1711 = vadd.f32 %v1502, %v1637
        %v1712 = vadd.f32 %v1503, %v1639
        %v1713 = vadd.f32 %v1504, %v1641
        %v1714 = vadd.f32 %v1505, %v1643
        %v1715 = vadd.f32 %v1506, %v1645
        %v1716 = vadd.f32 %v1507, %v1647
        %v1717 = vadd.f32 %v1508, %v1649
        %v1718 = vadd.f32 %v1509, %v1651
        %v1719 = vadd.f32 %v1510, %v1653
        %v1720 = vadd.f32 %v1511, %v1655
        %v1721 = vadd.f32 %v1512, %v1657
        %v1722 = vmax.f32 %v1690, 0.0
        %v1723 = vmax.f32 %v1691, 0.0
        %v1724 = vmax.f32 %v1692, 0.0
        %v1725 = vmax.f32 %v1693, 0.0
        %v1726 = vmax.f32 %v1694, 0.0
        %v1727 = vmax.f32 %v1695, 0.0
        %v1728 = vmax.f32 %v1696, 0.0
        %v1729 = vmax.f32 %v1697, 0.0
        %v1730 = vmax.f32 %v1698, 0.0
        %v1731 = vmax.f32 %v1699, 0.0
        %v1732 = vmax.f32 %v1700, 0.0
        %v1733 = vmax.f32 %v1701, 0.0
        %v1734 = vmax.f32 %v1702, 0.0
        %v1735 = vmax.f32 %v1703, 0.0
        %v1736 = vmax.f32 %v1704, 0.0
        %v1737 = vmax.f32 %v1705, 0.0
        %v1738 = vmax.f32 %v1706, 0.0
        %v1739 = vmax.f32 %v1707, 0.0
        %v1740 = vmax.f32 %v1708, 0.0
        %v1741 = vmax.f32 %v1709, 0.0
        %v1742 = vmax.f32 %v1710, 0.0
        %v1743 = vmax.f32 %v1711, 0.0
        %v1744 = vmax.f32 %v1712, 0.0
        %v1745 = vmax.f32 %v1713, 0.0
        %v1746 = vmax.f32 %v1714, 0.0
        %v1747 = vmax.f32 %v1715, 0.0
        %v1748 = vmax.f32 %v1716, 0.0
        %v1749 = vmax.f32 %v1717, 0.0
        %v1750 = vmax.f32 %v1718, 0.0
        %v1751 = vmax.f32 %v1719, 0.0
        %v1752 = vmax.f32 %v1720, 0.0
        %v1753 = vmax.f32 %v1721, 0.0
        %v1754 = vpack.c.bf16 %v1723, %v1722
        %v1755 = vpack.c.bf16 %v1725, %v1724
        %v1756 = vpack.c.bf16 %v1727, %v1726
        %v1757 = vpack.c.bf16 %v1729, %v1728
        %v1758 = vpack.c.bf16 %v1731, %v1730
        %v1759 = vpack.c.bf16 %v1733, %v1732
        %v1760 = vpack.c.bf16 %v1735, %v1734
        %v1761 = vpack.c.bf16 %v1737, %v1736
        %v1762 = vpack.c.bf16 %v1739, %v1738
        %v1763 = vpack.c.bf16 %v1741, %v1740
        %v1764 = vpack.c.bf16 %v1743, %v1742
        %v1765 = vpack.c.bf16 %v1745, %v1744
        %v1766 = vpack.c.bf16 %v1747, %v1746
        %v1767 = vpack.c.bf16 %v1749, %v1748
        %v1768 = vpack.c.bf16 %v1751, %v1750
        %v1769 = vpack.c.bf16 %v1753, %v1752
        %v1770 = vld [vmem:[%s2] sm:$0xf]
        %v1771 = vld [vmem:[%s2 + $0x4] sm:$0xf]
        %v1772 = vld [vmem:[%s2 + $0x8] sm:$0xf]
        %v1773 = vld [vmem:[%s2 + $0xc] sm:$0xf]
        %v1778 = vunpack.c.l.b16 %v1770
        %v1779 = vunpack.c.l.b16 %v1771
        %v1780 = vunpack.c.l.b16 %v1772
        %v1781 = vunpack.c.l.b16 %v1773
        %v1782 = vpack.c.b16 %v1779, %v1778
        %v1783 = vpack.c.b16 %v1781, %v1780
        %vm1786 = vcmask 261120
        %v1788 = vsel %vm1786, %v1754, 0
        %v1791 = vsel %vm1786, %v1755, 0
        %v1794 = vsel %vm1786, %v1756, 0
        %v1797 = vsel %vm1786, %v1757, 0
        %v1800 = vsel %vm1786, %v1758, 0
        %v1803 = vsel %vm1786, %v1759, 0
        %v1806 = vsel %vm1786, %v1760, 0
        %v1809 = vsel %vm1786, %v1761, 0
        %v1812 = vsel %vm1786, %v1762, 0
        %v1815 = vsel %vm1786, %v1763, 0
        %v1818 = vsel %vm1786, %v1764, 0
        %v1821 = vsel %vm1786, %v1765, 0
        %v1824 = vsel %vm1786, %v1766, 0
        %v1827 = vsel %vm1786, %v1767, 0
        %v1830 = vsel %vm1786, %v1768, 0
        %v1833 = vsel %vm1786, %v1769, 0
        %1835 = vmatprep.subr.bf16.mxu0 0
        %1836 = vmatpush1.bf16.msra.mxu0 %v1782
        %1837 = vmatprep.subr.bf16.mxu0 0
        %1838 = vmatpush1.bf16.msra.mxu0 %v1783
        %1839 = vmatprep.subr.bf16.mxu0 0
        %1840 = vmatpush1.bf16.msra.mxu0 0
        %1841 = vmatprep.subr.bf16.mxu0 0
        %1842 = vmatpush1.bf16.msra.mxu0 0
        %1843 = vmatprep.subr.bf16.mxu0 0
        %1844 = vmatpush1.bf16.msra.mxu0 0
        %1845 = vmatprep.subr.bf16.mxu0 0
        %1846 = vmatpush1.bf16.msra.mxu0 0
        %1847 = vmatprep.subr.bf16.mxu0 0
        %1848 = vmatpush1.bf16.msra.mxu0 0
        %1849 = vmatprep.subr.bf16.mxu0 0
        %1850 = vmatpush1.bf16.msra.mxu0 0
        %1851 = vmatprep.subr.bf16.mxu0 0
        %1852 = vmatpush1.bf16.msra.mxu0 0
        %1853 = vmatprep.subr.bf16.mxu0 0
        %1854 = vmatpush1.bf16.msra.mxu0 0
        %1855 = vmatprep.subr.bf16.mxu0 0
        %1856 = vmatpush1.bf16.msra.mxu0 0
        %1857 = vmatprep.subr.bf16.mxu0 0
        %1858 = vmatpush1.bf16.msra.mxu0 0
        %1859 = vmatprep.subr.bf16.mxu0 0
        %1860 = vmatpush1.bf16.msra.mxu0 0
        %1861 = vmatprep.subr.bf16.mxu0 0
        %1862 = vmatpush1.bf16.msra.mxu0 0
        %1863 = vmatprep.subr.bf16.mxu0 0
        %1864 = vmatpush1.bf16.msra.mxu0 0
        %1865 = vmatprep.subr.bf16.mxu0 0
        %1866 = vmatpush1.bf16.msra.mxu0 0
        %1867 = vmatprep.mubr.bf16.mxu0 0
        %1868 = vmatmul.mubr.bf16.gmra.mrb[0].mxu0 %v1788
        %v1869 = vpop.f32.mrb[0].mxu0
        %v1870 = vadd.f32 0.0, %v1869
        %v1871 = vpop.f32.mrb[0].mxu0
        %v1872 = vpop.f32.mrb[0].mxu0
        %v1873 = vadd.f32 0.0, %v1872
        %v1874 = vpop.f32.mrb[0].mxu0
        %1875 = vmatprep.mubr.bf16.mxu0 0
        %1876 = vmatmul.mubr.bf16.gmra.mrb[0].mxu0 %v1791
        %v1877 = vpop.f32.mrb[0].mxu0
        %v1878 = vadd.f32 0.0, %v1877
        %v1879 = vpop.f32.mrb[0].mxu0
        %v1880 = vpop.f32.mrb[0].mxu0
        %v1881 = vadd.f32 0.0, %v1880
        %v1882 = vpop.f32.mrb[0].mxu0
        %1883 = vmatprep.mubr.bf16.mxu0 0
        %1884 = vmatmul.mubr.bf16.gmra.mrb[0].mxu0 %v1794
        %v1885 = vpop.f32.mrb[0].mxu0
        %v1886 = vadd.f32 0.0, %v1885
        %v1887 = vpop.f32.mrb[0].mxu0
        %v1888 = vpop.f32.mrb[0].mxu0
        %v1889 = vadd.f32 0.0, %v1888
        %v1890 = vpop.f32.mrb[0].mxu0
        %1891 = vmatprep.mubr.bf16.mxu0 0
        %1892 = vmatmul.mubr.bf16.gmra.mrb[0].mxu0 %v1797
        %v1893 = vpop.f32.mrb[0].mxu0
        %v1894 = vadd.f32 0.0, %v1893
        %v1895 = vpop.f32.mrb[0].mxu0
        %v1896 = vpop.f32.mrb[0].mxu0
        %v1897 = vadd.f32 0.0, %v1896
        %v1898 = vpop.f32.mrb[0].mxu0
        %1899 = vmatprep.mubr.bf16.mxu0 0
        %1900 = vmatmul.mubr.bf16.gmra.mrb[0].mxu0 %v1800
        %v1901 = vpop.f32.mrb[0].mxu0
        %v1902 = vadd.f32 0.0, %v1901
        %v1903 = vpop.f32.mrb[0].mxu0
        %v1904 = vpop.f32.mrb[0].mxu0
        %v1905 = vadd.f32 0.0, %v1904
        %v1906 = vpop.f32.mrb[0].mxu0
        %1907 = vmatprep.mubr.bf16.mxu0 0
        %1908 = vmatmul.mubr.bf16.gmra.mrb[0].mxu0 %v1803
        %v1909 = vpop.f32.mrb[0].mxu0
        %v1910 = vadd.f32 0.0, %v1909
        %v1911 = vpop.f32.mrb[0].mxu0
        %v1912 = vpop.f32.mrb[0].mxu0
        %v1913 = vadd.f32 0.0, %v1912
        %v1914 = vpop.f32.mrb[0].mxu0
        %1915 = vmatprep.mubr.bf16.mxu0 0
        %1916 = vmatmul.mubr.bf16.gmra.mrb[0].mxu0 %v1806
        %v1917 = vpop.f32.mrb[0].mxu0
        %v1918 = vadd.f32 0.0, %v1917
        %v1919 = vpop.f32.mrb[0].mxu0
        %v1920 = vpop.f32.mrb[0].mxu0
        %v1921 = vadd.f32 0.0, %v1920
        %v1922 = vpop.f32.mrb[0].mxu0
        %1923 = vmatprep.mubr.bf16.mxu0 0
        %1924 = vmatmul.mubr.bf16.gmra.mrb[0].mxu0 %v1809
        %v1925 = vpop.f32.mrb[0].mxu0
        %v1926 = vadd.f32 0.0, %v1925
        %v1927 = vpop.f32.mrb[0].mxu0
        %v1928 = vpop.f32.mrb[0].mxu0
        %v1929 = vadd.f32 0.0, %v1928
        %v1930 = vpop.f32.mrb[0].mxu0
        %1931 = vmatprep.mubr.bf16.mxu0 0
        %1932 = vmatmul.mubr.bf16.gmra.mrb[0].mxu0 %v1812
        %v1933 = vpop.f32.mrb[0].mxu0
        %v1934 = vadd.f32 0.0, %v1933
        %v1935 = vpop.f32.mrb[0].mxu0
        %v1936 = vpop.f32.mrb[0].mxu0
        %v1937 = vadd.f32 0.0, %v1936
        %v1938 = vpop.f32.mrb[0].mxu0
        %1939 = vmatprep.mubr.bf16.mxu0 0
        %1940 = vmatmul.mubr.bf16.gmra.mrb[0].mxu0 %v1815
        %v1941 = vpop.f32.mrb[0].mxu0
        %v1942 = vadd.f32 0.0, %v1941
        %v1943 = vpop.f32.mrb[0].mxu0
        %v1944 = vpop.f32.mrb[0].mxu0
        %v1945 = vadd.f32 0.0, %v1944
        %v1946 = vpop.f32.mrb[0].mxu0
        %1947 = vmatprep.mubr.bf16.mxu0 0
        %1948 = vmatmul.mubr.bf16.gmra.mrb[0].mxu0 %v1818
        %v1949 = vpop.f32.mrb[0].mxu0
        %v1950 = vadd.f32 0.0, %v1949
        %v1951 = vpop.f32.mrb[0].mxu0
        %v1952 = vpop.f32.mrb[0].mxu0
        %v1953 = vadd.f32 0.0, %v1952
        %v1954 = vpop.f32.mrb[0].mxu0
        %1955 = vmatprep.mubr.bf16.mxu0 0
        %1956 = vmatmul.mubr.bf16.gmra.mrb[0].mxu0 %v1821
        %v1957 = vpop.f32.mrb[0].mxu0
        %v1958 = vadd.f32 0.0, %v1957
        %v1959 = vpop.f32.mrb[0].mxu0
        %v1960 = vpop.f32.mrb[0].mxu0
        %v1961 = vadd.f32 0.0, %v1960
        %v1962 = vpop.f32.mrb[0].mxu0
        %1963 = vmatprep.mubr.bf16.mxu0 0
        %1964 = vmatmul.mubr.bf16.gmra.mrb[0].mxu0 %v1824
        %v1965 = vpop.f32.mrb[0].mxu0
        %v1966 = vadd.f32 0.0, %v1965
        %v1967 = vpop.f32.mrb[0].mxu0
        %v1968 = vpop.f32.mrb[0].mxu0
        %v1969 = vadd.f32 0.0, %v1968
        %v1970 = vpop.f32.mrb[0].mxu0
        %1971 = vmatprep.mubr.bf16.mxu0 0
        %1972 = vmatmul.mubr.bf16.gmra.mrb[0].mxu0 %v1827
        %v1973 = vpop.f32.mrb[0].mxu0
        %v1974 = vadd.f32 0.0, %v1973
        %v1975 = vpop.f32.mrb[0].mxu0
        %v1976 = vpop.f32.mrb[0].mxu0
        %v1977 = vadd.f32 0.0, %v1976
        %v1978 = vpop.f32.mrb[0].mxu0
        %1979 = vmatprep.mubr.bf16.mxu0 0
        %1980 = vmatmul.mubr.bf16.gmra.mrb[0].mxu0 %v1830
        %v1981 = vpop.f32.mrb[0].mxu0
        %v1982 = vadd.f32 0.0, %v1981
        %v1983 = vpop.f32.mrb[0].mxu0
        %v1984 = vpop.f32.mrb[0].mxu0
        %v1985 = vadd.f32 0.0, %v1984
        %v1986 = vpop.f32.mrb[0].mxu0
        %1987 = vmatprep.mubr.bf16.mxu0 0
        %1988 = vmatmul.mubr.bf16.gmra.mrb[0].mxu0 %v1833
        %v1989 = vpop.f32.mrb[0].mxu0
        %v1990 = vadd.f32 0.0, %v1989
        %v1991 = vpop.f32.mrb[0].mxu0
        %v1992 = vpop.f32.mrb[0].mxu0
        %v1993 = vadd.f32 0.0, %v1992
        %v1994 = vpop.f32.mrb[0].mxu0
        %1995 = vdwg.mxu0
        %s1996 = smul.u32 %s185, 16
        %s1997 = scalar_lea.vmem %s182, %s1996
        %v1998 = vld [vmem:[%s1997] sm:$0xff]
        %v1999 = vld [vmem:[%s1997 + $0x8] sm:$0xff]
        %v2000 = vld [vmem:[%s1997 + $0x10] sm:$0xff]
        %v2001 = vld [vmem:[%s1997 + $0x18] sm:$0xff]
        %v2002 = vld [vmem:[%s1997 + $0x20] sm:$0xff]
        %v2003 = vld [vmem:[%s1997 + $0x28] sm:$0xff]
        %v2004 = vld [vmem:[%s1997 + $0x30] sm:$0xff]
        %v2005 = vld [vmem:[%s1997 + $0x38] sm:$0xff]
        %v2006 = vld [vmem:[%s1997 + $0x40] sm:$0xff]
        %v2007 = vld [vmem:[%s1997 + $0x48] sm:$0xff]
        %v2008 = vld [vmem:[%s1997 + $0x50] sm:$0xff]
        %v2009 = vld [vmem:[%s1997 + $0x58] sm:$0xff]
        %v2010 = vld [vmem:[%s1997 + $0x60] sm:$0xff]
        %v2011 = vld [vmem:[%s1997 + $0x68] sm:$0xff]
        %v2012 = vld [vmem:[%s1997 + $0x70] sm:$0xff]
        %v2013 = vld [vmem:[%s1997 + $0x78] sm:$0xff]
        %v2014 = vld [vmem:[%s1997 + $0x80] sm:$0xff]
        %v2015 = vld [vmem:[%s1997 + $0x88] sm:$0xff]
        %v2016 = vld [vmem:[%s1997 + $0x90] sm:$0xff]
        %v2017 = vld [vmem:[%s1997 + $0x98] sm:$0xff]
        %v2018 = vld [vmem:[%s1997 + $0xa0] sm:$0xff]
        %v2019 = vld [vmem:[%s1997 + $0xa8] sm:$0xff]
        %v2020 = vld [vmem:[%s1997 + $0xb0] sm:$0xff]
        %v2021 = vld [vmem:[%s1997 + $0xb8] sm:$0xff]
        %v2022 = vld [vmem:[%s1997 + $0xc0] sm:$0xff]
        %v2023 = vld [vmem:[%s1997 + $0xc8] sm:$0xff]
        %v2024 = vld [vmem:[%s1997 + $0xd0] sm:$0xff]
        %v2025 = vld [vmem:[%s1997 + $0xd8] sm:$0xff]
        %v2026 = vld [vmem:[%s1997 + $0xe0] sm:$0xff]
        %v2027 = vld [vmem:[%s1997 + $0xe8] sm:$0xff]
        %v2028 = vld [vmem:[%s1997 + $0xf0] sm:$0xff]
        %v2029 = vld [vmem:[%s1997 + $0xf8] sm:$0xff]
        %v2030 = vadd.f32 %v1998, %v1870
        %v2031 = vadd.f32 %v1999, %v1873
        %v2032 = vadd.f32 %v2000, %v1878
        %v2033 = vadd.f32 %v2001, %v1881
        %v2034 = vadd.f32 %v2002, %v1886
        %v2035 = vadd.f32 %v2003, %v1889
        %v2036 = vadd.f32 %v2004, %v1894
        %v2037 = vadd.f32 %v2005, %v1897
        %v2038 = vadd.f32 %v2006, %v1902
        %v2039 = vadd.f32 %v2007, %v1905
        %v2040 = vadd.f32 %v2008, %v1910
        %v2041 = vadd.f32 %v2009, %v1913
        %v2042 = vadd.f32 %v2010, %v1918
        %v2043 = vadd.f32 %v2011, %v1921
        %v2044 = vadd.f32 %v2012, %v1926
        %v2045 = vadd.f32 %v2013, %v1929
        %v2046 = vadd.f32 %v2014, %v1934
        %v2047 = vadd.f32 %v2015, %v1937
        %v2048 = vadd.f32 %v2016, %v1942
        %v2049 = vadd.f32 %v2017, %v1945
        %v2050 = vadd.f32 %v2018, %v1950
        %v2051 = vadd.f32 %v2019, %v1953
        %v2052 = vadd.f32 %v2020, %v1958
        %v2053 = vadd.f32 %v2021, %v1961
        %v2054 = vadd.f32 %v2022, %v1966
        %v2055 = vadd.f32 %v2023, %v1969
        %v2056 = vadd.f32 %v2024, %v1974
        %v2057 = vadd.f32 %v2025, %v1977
        %v2058 = vadd.f32 %v2026, %v1982
        %v2059 = vadd.f32 %v2027, %v1985
        %v2060 = vadd.f32 %v2028, %v1990
        %v2061 = vadd.f32 %v2029, %v1993
        %2062 = vst [vmem:[%s177] sm:$0xff] %v2030
        %2063 = vst [vmem:[%s177 + $0x8] sm:$0xff] %v2031
        %2064 = vst [vmem:[%s177 + $0x10] sm:$0xff] %v2032
        %2065 = vst [vmem:[%s177 + $0x18] sm:$0xff] %v2033
        %2066 = vst [vmem:[%s177 + $0x20] sm:$0xff] %v2034
        %2067 = vst [vmem:[%s177 + $0x28] sm:$0xff] %v2035
        %2068 = vst [vmem:[%s177 + $0x30] sm:$0xff] %v2036
        %2069 = vst [vmem:[%s177 + $0x38] sm:$0xff] %v2037
        %2070 = vst [vmem:[%s177 + $0x40] sm:$0xff] %v2038
        %2071 = vst [vmem:[%s177 + $0x48] sm:$0xff] %v2039
        %2072 = vst [vmem:[%s177 + $0x50] sm:$0xff] %v2040
        %2073 = vst [vmem:[%s177 + $0x58] sm:$0xff] %v2041
        %2074 = vst [vmem:[%s177 + $0x60] sm:$0xff] %v2042
        %2075 = vst [vmem:[%s177 + $0x68] sm:$0xff] %v2043
        %2076 = vst [vmem:[%s177 + $0x70] sm:$0xff] %v2044
        %2077 = vst [vmem:[%s177 + $0x78] sm:$0xff] %v2045
        %2078 = vst [vmem:[%s177 + $0x80] sm:$0xff] %v2046
        %2079 = vst [vmem:[%s177 + $0x88] sm:$0xff] %v2047
        %2080 = vst [vmem:[%s177 + $0x90] sm:$0xff] %v2048
        %2081 = vst [vmem:[%s177 + $0x98] sm:$0xff] %v2049
        %2082 = vst [vmem:[%s177 + $0xa0] sm:$0xff] %v2050
        %2083 = vst [vmem:[%s177 + $0xa8] sm:$0xff] %v2051
        %2084 = vst [vmem:[%s177 + $0xb0] sm:$0xff] %v2052
        %2085 = vst [vmem:[%s177 + $0xb8] sm:$0xff] %v2053
        %2086 = vst [vmem:[%s177 + $0xc0] sm:$0xff] %v2054
        %2087 = vst [vmem:[%s177 + $0xc8] sm:$0xff] %v2055
        %2088 = vst [vmem:[%s177 + $0xd0] sm:$0xff] %v2056
        %2089 = vst [vmem:[%s177 + $0xd8] sm:$0xff] %v2057
        %2090 = vst [vmem:[%s177 + $0xe0] sm:$0xff] %v2058
        %2091 = vst [vmem:[%s177 + $0xe8] sm:$0xff] %v2059
        %2092 = vst [vmem:[%s177 + $0xf0] sm:$0xff] %v2060
        %2093 = vst [vmem:[%s177 + $0xf8] sm:$0xff] %v2061
        %s2094 = sand.u32 %s107, 1
        %s2095 = scalar_lea.sflag [#allocation4], %s2094
        %s2096 = sand.u32 %s107, 1
        %s2097 = smul.addr %s2096, 256
        %s2098 = scalar_lea.vmem [#allocation3], %s2097
        // Predicated region
        $region37: #{residual_forward.1} parent=31 // pred_check
          %p2099 = pneg %p117
        $region38: #{residual_forward.1} parent=31 // pred_check_branch
          %2101 = sbr.rel (%p2099) target = $region40
        $region39: #{residual_forward.1} parent=31 // pred_region
          %s2102 = smul.u32 16, %s22
          %s2104 = ssub.s32 4096, 4096
          %2105 = vsyncadd %s2095, %s2104
          %s2106 = smul.addr %s2102, 2
          %s2107 = smul.addr %s21, 32
          %s2108 = sadd.s32 %s2106, %s2107
          %s2109 = smul.addr %s2108, 128
          %s2110 = scalar_lea.hbm %s3, %s2109
          %s2111 = sshll.u32 %s2098, 4
          %s2112 = int_to_ptr.vmem [resolvable:$true] %s2111
          %2117 = dma.vmem_to_hbm [thread:$0]  %s2112, 4096, %s2110, %s2095, 128, 128, 8
        $region40: #{residual_forward.1} parent=31 // pred_fallthru
          _
      $region32: #{residual_forward.1} parent=5 // pred_fallthru
        _
      %p2118 = scmp.le.s32.totalorder 2, %s12
      // Predicated region
      $region41: #{residual_forward.1} parent=5 // pred_check
        %p2119 = pneg %p2118
      $region42: #{residual_forward.1} parent=5 // pred_check_branch
        %2121 = sbr.rel (%p2119) target = $region44
      $region43: #{residual_forward.1} parent=5 // pred_region
        %s2122 = ssub.s32 %s12, 2
        // Predicated region
        $region45: #{residual_forward.1} parent=43 // pred_check
          %p2123 = pneg %p123
        $region46: #{residual_forward.1} parent=43 // pred_check_branch
          %2125 = sbr.rel (%p2123) target = $region48
        $region47: #{residual_forward.1} parent=43 // pred_region
          %s2126 = sand.u32 %s108, 1
          %s2127 = scalar_lea.sflag [#allocation4], %s2126
          %s2128 = sand.u32 %s108, 1
          %s2129 = smul.addr %s2128, 256
          %s2130 = scalar_lea.vmem [#allocation3], %s2129
          %2131 = dma.done %s2127, 4096
        $region48: #{residual_forward.1} parent=43 // pred_fallthru
          _
      $region44: #{residual_forward.1} parent=5 // pred_fallthru
        _
    $region6: #{residual_forward.1} parent=1 // loop_footer
      %s16 = sadd.s32 1, %s12
    $region7: #{residual_forward.1} parent=1 // loop_footer_branch
      %11 = sbr.rel target = $region3
    $region8: #{residual_forward.1} parent=1 // loop_exit
      _
    %2132 = vsyncpa [#allocation4], 1
    %s2133 = scalar_lea.sflag [#allocation4], 1
    %2134 = vsyncpa %s2133, 1

</llo_original>
